<compile_context>
chip_gen: v6e
topology: v6e:2x2x1
jax: 0.10.0
libtpu: 0.0.40
codegen_flags: <defaults>
</compile_context>

<pallas_src>
import functools

import jax
import jax.numpy as jnp
from jax import lax
from jax.experimental import pallas as pl
from jax.experimental.pallas import tpu as pltpu

DIAG_CHANNEL = 128


def _gc_kernel(x_ref, wa_ref, ba_ref, wd_ref, bd_ref, w_ref, o_ref, *,
               res_connect: bool, n_valid: int, mxu_dtype):
    f32 = jnp.float32
    x = x_ref[...]                                   # (Bt, C, Np), caller dtype
    wa = wa_ref[...]                                 # (128, C)  adjacency_conv weight
    ba = ba_ref[...].astype(f32)                     # (128, 1)  adjacency_conv bias
    wd = wd_ref[...].astype(f32)                     # (128, C)  diagonal_conv weight
    bd = bd_ref[...].astype(f32)                     # (128, 1)  diagonal_conv bias
    w = w_ref[...]                                   # (O, C)    graph-conv weight

    n_pad = x.shape[-1]

    # Adjacency head 1x1 Conv1d (caller-dtype operands, f32 accumulate).  Kept
    # at caller precision so the rank-1 0.5*outer(u,u) term below stays tight.
    xa = jnp.einsum('dc,bcn->bdn', wa, x, preferred_element_type=f32) + ba[None]
    if n_pad != n_valid:
        # The conv bias leaks into padded node lanes; zero them so they never
        # perturb the adjacency / degrees of real nodes.
        lane = lax.broadcasted_iota(jnp.int32, (1, 1, n_pad), 2)
        xa = jnp.where(lane < n_valid, xa, 0.0)

    # Diagonal head via linearity of 1x1 Conv1d + avg_pool1d:
    #   v = mean_n(wd @ x + bd) = wd @ mean_n(x) + bd   (exact up to fp reassoc.)
    # Padded lanes of x are zero, so sum over Np / n_valid is the true mean.
    xmean = jnp.sum(x.astype(f32), axis=-1) * (1.0 / n_valid)        # (Bt, C)
    v = jnp.einsum('bc,dc->bd', xmean, wd,
                   preferred_element_type=f32) + bd[:, 0][None, :]   # (Bt, 128)
    # The PyTorch module sigmoids the FULL diag-embedded (128,128) matrix, so
    # its off-diagonals become sigmoid(0) = 0.5:
    #   xa^T M xa = xa^T diag(sigmoid(v)-0.5) xa + 0.5 * outer(u, u), u = 1^T xa
    s = jax.nn.sigmoid(v) - 0.5                                      # (Bt, 128)

    u = jnp.sum(xa, axis=1)                                          # (Bt, Np) f32
    # NOTE(perf): contracts over the 128-channel dim of both operands; Mosaic
    # may relayout one operand per step (accepted -- MXU work dominates).
    a = jnp.einsum('bdn,bdm->bnm',
                   (xa * s[:, :, None]).astype(mxu_dtype),
                   xa.astype(mxu_dtype),
                   preferred_element_type=f32)                       # (Bt, Np, Np)
    a = a + 0.5 * (u[:, :, None] * u[:, None, :])

    # _normalize: relu, +I (identity built in-kernel; no (N,N) input / DMA),
    # symmetric degree normalization folded into the downstream matmul.
    rows = lax.broadcasted_iota(jnp.int32, (n_pad, n_pad), 0)
    cols = lax.broadcasted_iota(jnp.int32, (n_pad, n_pad), 1)
    eye = (rows == cols).astype(f32)
    a_hat = jnp.maximum(a, 0.0) + eye[None]                          # symmetric

    # Symmetric -> row sums == column sums; axis=1 gives the (Bt, 1, Np)
    # broadcast shape directly (no vector transpose).  Degrees computed in f32.
    d = lax.rsqrt(jnp.sum(a_hat, axis=1, keepdims=True))             # (Bt, 1, Np)

    # x @ (diag(d) A_hat diag(d)) == ((x * d) @ A_hat) * d  -- a_norm never built.
    # Graph-conv matmuls run with mxu_dtype operands, f32 accumulation.
    a_hat_m = a_hat.astype(mxu_dtype)
    xs = (x.astype(f32) * d).astype(mxu_dtype)                       # (Bt, C, Np)
    w_m = w.astype(mxu_dtype)
    out_c, in_c = w.shape
    if out_c < in_c:
        # Shrink the channel dim before the Np x Np-sided matmul.
        z = jnp.einsum('oc,bcn->bon', w_m, xs, preferred_element_type=f32)
        z = jnp.einsum('bon,bnm->bom', z.astype(mxu_dtype), a_hat_m,
                       preferred_element_type=f32) * d
    else:
        zm = jnp.einsum('bcn,bnm->bcm', xs, a_hat_m,
                        preferred_element_type=f32) * d
        z = jnp.einsum('oc,bcm->bom', w_m, zm.astype(mxu_dtype),
                       preferred_element_type=f32)

    out = jnp.maximum(z, 0.0)
    if res_connect:
        out = out + x.astype(f32)
    o_ref[...] = out.astype(o_ref.dtype)


def _vmem_config():
    """Per-generation (vmem_limit_bytes, per-step tile budget, two_tensorcores)."""
    kind = ""
    try:
        kind = jax.devices()[0].device_kind.lower()
    except Exception:
        pass
    vmem_cap = None
    try:
        vmem_cap = int(getattr(pltpu.get_tpu_info(), "vmem_capacity_bytes", 0)) or None
    except Exception:
        pass
    is_v7 = ("v7" in kind) or (vmem_cap is not None and vmem_cap < 96 * 2**20)
    big_vmem = (vmem_cap is not None and vmem_cap >= 96 * 2**20) or \
               ("v5" in kind) or ("v6" in kind)
    if big_vmem and not is_v7:
        # v5e / v6e: 128 MiB physical VMEM, single TensorCore per chip.
        return 100 * 2**20, 56 * 2**20, False
    # v7x (or unknown -> conservative): 64 MiB per TensorCore, 2 TCs per chip.
    return 48 * 2**20, 22 * 2**20, True


def _pick_batch_tile(B, C, N, out_c, vmem_budget_bytes, two_tensorcores):
    """Batch-chunk size (bt) and grid-step count.  The per-batch f32 working-set
    estimate includes the previously untracked temporaries (outer(u,u), the
    a -> a_hat copy, pre-store f32 result, low-precision operand copies) plus a
    1.4x safety factor for Mosaic-internal scratch."""
    per_b = 4 * (2 * C * N                  # x block (double-buffered)
                 + 2 * out_c * N            # out block (double-buffered)
                 + 3 * DIAG_CHANNEL * N     # xa + scaled / low-precision copies
                 + 4 * N * N                # a, a_hat, outer(u,u), bf16 copy
                 + 3 * C * N                # xs + intermediate + bf16 copy
                 + 2 * out_c * N)           # pre-store f32 result + residual temp
    per_b = int(per_b * 1.4)
    bt = max(1, min(B, vmem_budget_bytes // max(per_b, 1)))
    steps = pl.cdiv(B, bt)
    if two_tensorcores and B >= 2:
        # v7x only: keep >=2 steps and an even step count so both TensorCores
        # get a balanced share.  v5e/v6e (single TC) take the largest chunk
        # their VMEM allows.
        if steps < 2:
            steps = 2
        if steps % 2:
            steps += 1
        bt = max(1, pl.cdiv(B, steps))
        steps = pl.cdiv(B, bt)
    return bt, steps


def fully_connect_gc_layer(x, wa, ba, wd, bd, w, *, res_connect=True,
                           mxu_dtype=jnp.bfloat16):
    """x: (B, C, N).  wa/wd: (128, C) 1x1-conv weights, ba/bd: (128, 1) biases,
    w: (out_C, C) graph-conv weight.  Returns (B, out_C, N).

    mxu_dtype sets the operand dtype of the N x N-sided matmuls (adjacency build
    and graph conv); accumulation is always f32.  Pass jnp.float32 when tighter
    parity with an f32 reference is required (at ~3-4x MXU cost on v6e/v7x)."""
    B, C, N = x.shape
    out_c = w.shape[0]
    if res_connect and out_c != C:
        raise ValueError("res_connect requires out_channel == in_channel")

    vmem_limit, tile_budget, two_tc = _vmem_config()

    # Lane-dense node dim: pad N to a multiple of 128 so MXU output tiles are
    # full and output stores are unmasked (vst, not vst.msk).  Padded node
    # columns are masked in-kernel and never affect real nodes.
    n_pad = 128 * pl.cdiv(N, 128)

    bt, steps = _pick_batch_tile(B, C, n_pad, out_c, tile_budget, two_tc)
    b_pad = bt * steps            # pad B instead of collapsing bt to a divisor

    xp = x
    if n_pad != N or b_pad != B:
        xp = jnp.pad(x, ((0, b_pad - B), (0, 0), (0, n_pad - N)))

    kernel = functools.partial(_gc_kernel, res_connect=res_connect,
                               n_valid=N, mxu_dtype=mxu_dtype)

    in_specs = [
        pl.BlockSpec((bt, C, n_pad), lambda b: (b, 0, 0)),        # x batch chunk
        pl.BlockSpec((DIAG_CHANNEL, C), lambda b: (0, 0)),        # adjacency_conv w
        pl.BlockSpec((DIAG_CHANNEL, 1), lambda b: (0, 0)),        # adjacency_conv b
        pl.BlockSpec((DIAG_CHANNEL, C), lambda b: (0, 0)),        # diagonal_conv w
        pl.BlockSpec((DIAG_CHANNEL, 1), lambda b: (0, 0)),        # diagonal_conv b
        pl.BlockSpec((out_c, C), lambda b: (0, 0)),               # graph-conv w
    ]
    out_specs = pl.BlockSpec((bt, out_c, n_pad), lambda b: (b, 0, 0))

    out = pl.pallas_call(
        kernel,
        out_shape=jax.ShapeDtypeStruct((b_pad, out_c, n_pad), x.dtype),
        grid=(steps,),
        in_specs=in_specs,
        out_specs=out_specs,
        compiler_params=pltpu.CompilerParams(
            dimension_semantics=("parallel",),
            vmem_limit_bytes=vmem_limit,
        ),
    )(xp, wa, ba, wd, bd, w)

    if n_pad != N or b_pad != B:
        out = out[:B, :, :N]
    return out


def _reference(x, wa, ba, wd, bd, w, *, res_connect=True):
    """Pure-JAX transcription of FullyConnectGCLayer.forward (including the
    sigmoid over the full diag-embedded matrix, whose off-diagonals are 0.5)."""
    dot = functools.partial(jnp.dot, precision=lax.Precision.HIGHEST)
    _, _, N = x.shape
    outs = []
    for xb in x:                                            # xb: (C, N)
        xd = dot(wd, xb) + bd                               # diagonal_conv
        v = jnp.mean(xd, axis=1)                            # avg_pool1d over all nodes
        m = jax.nn.sigmoid(jnp.diag(v))                     # sigmoid of FULL (128,128) matrix
        xa = dot(wa, xb) + ba                               # adjacency_conv
        a = dot(xa.T, dot(m, xa))                           # (N, N)
        a_hat = jnp.maximum(a, 0.0) + jnp.eye(N, dtype=jnp.float32)
        deg = jnp.sum(a_hat, axis=1) ** -0.5
        a_norm = deg[:, None] * a_hat * deg[None, :]
        out = jnp.maximum(dot(w, dot(xb, a_norm)), 0.0)
        if res_connect:
            out = out + xb
        outs.append(out)
    return jnp.stack(outs)


if __name__ == "__main__":
    B, C, N = 2, 16, 16            # batch, in_channel (== out_channel), node_num
    out_c = C

    key = jax.random.PRNGKey(0)
    k1, k2, k3, k4, k5, k6 = jax.random.split(key, 6)

    x = jax.random.normal(k1, (B, C, N), dtype=jnp.float32)

    # Deterministic synthetic parameters (shapes follow the module's __init__).
    wa = jax.random.normal(k2, (DIAG_CHANNEL, C), dtype=jnp.float32) * 0.1   # adjacency_conv
    ba = jax.random.normal(k3, (DIAG_CHANNEL, 1), dtype=jnp.float32) * 0.1
    wd = jax.random.normal(k4, (DIAG_CHANNEL, C), dtype=jnp.float32) * 0.1   # diagonal_conv
    bd = jax.random.normal(k5, (DIAG_CHANNEL, 1), dtype=jnp.float32) * 0.1
    w = jax.random.normal(k6, (out_c, C), dtype=jnp.float32) * 0.01          # self.weight

    ref = _reference(x, wa, ba, wd, bd, w, res_connect=True)

    # Fast path: bf16 MXU operands, f32 accumulation.  Accepted tolerance for
    # the low-precision operand matmuls is 2e-2 (abs + rel).
    out = fully_connect_gc_layer(x, wa, ba, wd, bd, w, res_connect=True)
    out = jax.block_until_ready(out)
    assert out.shape == (B, out_c, N)
    assert jnp.allclose(out, ref, atol=2e-2, rtol=2e-2), "bf16-MXU mismatch vs reference"

    # Parity path: f32 MXU operands for callers that need tighter agreement.
    out_f32 = fully_connect_gc_layer(x, wa, ba, wd, bd, w, res_connect=True,
                                     mxu_dtype=jnp.float32)
    out_f32 = jax.block_until_ready(out_f32)
    assert jnp.allclose(out_f32, ref, atol=3e-3, rtol=3e-3), "f32-MXU mismatch vs reference"

    print("KERNEL_OK")
</pallas_src>

<mosaic_0001>
module attributes {stable_mosaic.version = 11 : i64} {
  func.func @_gc_kernel(%arg0: i32, %arg1: memref<1x16x128xf32, #tpu.memory_space<vmem>>, %arg2: memref<128x16xf32, #tpu.memory_space<vmem>>, %arg3: memref<128x1xf32, #tpu.memory_space<vmem>>, %arg4: memref<128x16xf32, #tpu.memory_space<vmem>>, %arg5: memref<128x1xf32, #tpu.memory_space<vmem>>, %arg6: memref<16x16xf32, #tpu.memory_space<vmem>>, %arg7: memref<1x16x128xf32, #tpu.memory_space<vmem>>) attributes {dimension_semantics = [#tpu.dimension_semantics<parallel>], iteration_bounds = array<i64: 2>, scalar_prefetch = 0 : i64, scratch_operands = 0 : i64, tpu.core_type = #tpu.core_type<tc>, window_params = [{transform_indices = @transform_0, window_bounds = array<i64: 1, 16, 128>}, {pipeline_mode = #tpu.pipeline_mode<synchronous>, transform_indices = @transform_1, window_bounds = array<i64: 128, 16>}, {pipeline_mode = #tpu.pipeline_mode<synchronous>, transform_indices = @transform_2, window_bounds = array<i64: 128, 1>}, {pipeline_mode = #tpu.pipeline_mode<synchronous>, transform_indices = @transform_3, window_bounds = array<i64: 128, 16>}, {pipeline_mode = #tpu.pipeline_mode<synchronous>, transform_indices = @transform_4, window_bounds = array<i64: 128, 1>}, {pipeline_mode = #tpu.pipeline_mode<synchronous>, transform_indices = @transform_5, window_bounds = array<i64: 16, 16>}, {transform_indices = @transform_6, window_bounds = array<i64: 1, 16, 128>}]} {
    %c0 = arith.constant 0 : index
    %c0_0 = arith.constant 0 : index
    %c0_1 = arith.constant 0 : index
    %0 = vector.load %arg1[%c0, %c0_0, %c0_1] : memref<1x16x128xf32, #tpu.memory_space<vmem>>, vector<1x16x128xf32>
    %c0_2 = arith.constant 0 : index
    %c0_3 = arith.constant 0 : index
    %1 = vector.load %arg2[%c0_2, %c0_3] : memref<128x16xf32, #tpu.memory_space<vmem>>, vector<128x16xf32>
    %c0_4 = arith.constant 0 : index
    %c0_5 = arith.constant 0 : index
    %2 = vector.load %arg3[%c0_4, %c0_5] : memref<128x1xf32, #tpu.memory_space<vmem>>, vector<128x1xf32>
    %c0_6 = arith.constant 0 : index
    %c0_7 = arith.constant 0 : index
    %3 = vector.load %arg4[%c0_6, %c0_7] : memref<128x16xf32, #tpu.memory_space<vmem>>, vector<128x16xf32>
    %c0_8 = arith.constant 0 : index
    %c0_9 = arith.constant 0 : index
    %4 = vector.load %arg5[%c0_8, %c0_9] : memref<128x1xf32, #tpu.memory_space<vmem>>, vector<128x1xf32>
    %c0_10 = arith.constant 0 : index
    %c0_11 = arith.constant 0 : index
    %5 = vector.load %arg6[%c0_10, %c0_11] : memref<16x16xf32, #tpu.memory_space<vmem>>, vector<16x16xf32>
    "tpu.trace_start"() <{level = 10 : i32, message = "dc,bcn->bdn"}> : () -> ()
    %cst = arith.constant dense<0.000000e+00> : vector<1x128x128xf32>
    %6 = tpu.matmul %0, %1, %cst {dimension_numbers = #tpu.dot_dimension_numbers<[1], [1], [0, 2], [0], [0, 0, 0, 2, 1, 0], [], []>} : vector<1x16x128xf32>, vector<128x16xf32>, vector<1x128x128xf32> -> vector<1x128x128xf32>
    %7 = tpu.transpose %6, [0, 2, 1] : vector<1x128x128xf32> -> vector<1x128x128xf32>
    "tpu.trace_stop"() : () -> ()
    %8 = vector.shape_cast %2 : vector<128x1xf32> to vector<1x128x1xf32>
    %9 = vector.broadcast %8 : vector<1x128x1xf32> to vector<1x128x128xf32>
    %10 = arith.addf %7, %9 : vector<1x128x128xf32>
    %11 = tpu.iota {dimensions = array<i32: 2>} : vector<1x1x128xi32>
    %c16_i32 = arith.constant 16 : i32
    %12 = vector.broadcast %c16_i32 : i32 to vector<1x1x128xi32>
    %13 = arith.cmpi slt, %11, %12 : vector<1x1x128xi32>
    %cst_12 = arith.constant 0.000000e+00 : f32
    %14 = vector.shape_cast %13 : vector<1x1x128xi1> to vector<1x1x128xi1>
    %15 = vector.broadcast %14 : vector<1x1x128xi1> to vector<1x128x128xi1>
    %16 = vector.broadcast %cst_12 : f32 to vector<1x128x128xf32>
    %17 = arith.select %15, %10, %16 : vector<1x128x128xi1>, vector<1x128x128xf32>
    %cst_13 = arith.constant dense<0.000000e+00> : vector<1x16xf32>
    %18 = vector.multi_reduction <add>, %0, %cst_13 [2] : vector<1x16x128xf32> to vector<1x16xf32>
    %cst_14 = arith.constant 6.250000e-02 : f32
    %19 = vector.broadcast %cst_14 : f32 to vector<1x16xf32>
    %20 = arith.mulf %18, %19 : vector<1x16xf32>
    "tpu.trace_start"() <{level = 10 : i32, message = "bc,dc->bd"}> : () -> ()
    %cst_15 = arith.constant dense<0.000000e+00> : vector<1x128xf32>
    %21 = tpu.matmul %20, %3, %cst_15 {dimension_numbers = #tpu.dot_dimension_numbers<[1], [1], [0], [0], [0, 0, 1, 0], [], []>} : vector<1x16xf32>, vector<128x16xf32>, vector<1x128xf32> -> vector<1x128xf32>
    "tpu.trace_stop"() : () -> ()
    %22 = vector.shape_cast %4 : vector<128x1xf32> to vector<128xf32>
    %23 = vector.shape_cast %22 : vector<128xf32> to vector<1x128xf32>
    %24 = arith.addf %21, %23 : vector<1x128xf32>
    %25 = arith.negf %24 : vector<1x128xf32>
    %26 = math.exp %25 : vector<1x128xf32>
    %cst_16 = arith.constant 1.000000e+00 : f32
    %27 = vector.broadcast %cst_16 : f32 to vector<1x128xf32>
    %28 = arith.addf %27, %26 : vector<1x128xf32>
    %29 = arith.divf %27, %28 : vector<1x128xf32>
    %cst_17 = arith.constant 5.000000e-01 : f32
    %30 = vector.broadcast %cst_17 : f32 to vector<1x128xf32>
    %31 = arith.subf %29, %30 : vector<1x128xf32>
    %cst_18 = arith.constant dense<0.000000e+00> : vector<1x128xf32>
    %32 = vector.multi_reduction <add>, %17, %cst_18 [1] : vector<1x128x128xf32> to vector<1x128xf32>
    %33 = vector.shape_cast %31 : vector<1x128xf32> to vector<1x128x1xf32>
    %34 = vector.broadcast %33 : vector<1x128x1xf32> to vector<1x128x128xf32>
    %35 = arith.mulf %17, %34 : vector<1x128x128xf32>
    %36 = arith.truncf %35 : vector<1x128x128xf32> to vector<1x128x128xbf16>
    %37 = arith.truncf %17 : vector<1x128x128xf32> to vector<1x128x128xbf16>
    "tpu.trace_start"() <{level = 10 : i32, message = "bdn,bdm->bnm"}> : () -> ()
    %cst_19 = arith.constant dense<0.000000e+00> : vector<1x128x128xf32>
    %38 = tpu.matmul %36, %37, %cst_19 {dimension_numbers = #tpu.dot_dimension_numbers<[1], [1], [2], [2], [0, 0, 0, 2, 1, 2], [0], [0]>} : vector<1x128x128xbf16>, vector<1x128x128xbf16>, vector<1x128x128xf32> -> vector<1x128x128xf32>
    "tpu.trace_stop"() : () -> ()
    %39 = vector.shape_cast %32 : vector<1x128xf32> to vector<1x128x1xf32>
    %40 = vector.shape_cast %32 : vector<1x128xf32> to vector<1x1x128xf32>
    %41 = vector.broadcast %39 : vector<1x128x1xf32> to vector<1x128x128xf32>
    %42 = vector.broadcast %40 : vector<1x1x128xf32> to vector<1x128x128xf32>
    %43 = arith.mulf %41, %42 : vector<1x128x128xf32>
    %cst_20 = arith.constant 5.000000e-01 : f32
    %44 = vector.broadcast %cst_20 : f32 to vector<1x128x128xf32>
    %45 = arith.mulf %44, %43 : vector<1x128x128xf32>
    %46 = arith.addf %38, %45 : vector<1x128x128xf32>
    %47 = tpu.iota {dimensions = array<i32: 0>} : vector<128x128xi32>
    %48 = tpu.iota {dimensions = array<i32: 1>} : vector<128x128xi32>
    %49 = arith.cmpi eq, %47, %48 : vector<128x128xi32>
    %50 = arith.extui %49 : vector<128x128xi1> to vector<128x128xi32>
    %51 = arith.sitofp %50 : vector<128x128xi32> to vector<128x128xf32>
    %cst_21 = arith.constant 0.000000e+00 : f32
    %52 = vector.broadcast %cst_21 : f32 to vector<1x128x128xf32>
    %53 = arith.maximumf %46, %52 : vector<1x128x128xf32>
    %54 = vector.shape_cast %51 : vector<128x128xf32> to vector<1x128x128xf32>
    %55 = arith.addf %53, %54 : vector<1x128x128xf32>
    %cst_22 = arith.constant dense<0.000000e+00> : vector<1x128xf32>
    %56 = vector.multi_reduction <add>, %55, %cst_22 [1] : vector<1x128x128xf32> to vector<1x128xf32>
    %57 = vector.shape_cast %56 : vector<1x128xf32> to vector<1x1x128xf32>
    %58 = math.rsqrt %57 : vector<1x1x128xf32>
    %59 = arith.truncf %55 : vector<1x128x128xf32> to vector<1x128x128xbf16>
    %60 = vector.broadcast %58 : vector<1x1x128xf32> to vector<1x16x128xf32>
    %61 = arith.mulf %0, %60 : vector<1x16x128xf32>
    %62 = arith.truncf %61 : vector<1x16x128xf32> to vector<1x16x128xbf16>
    %63 = arith.truncf %5 : vector<16x16xf32> to vector<16x16xbf16>
    "tpu.trace_start"() <{level = 10 : i32, message = "bcn,bnm->bcm"}> : () -> ()
    %cst_23 = arith.constant dense<0.000000e+00> : vector<1x16x128xf32>
    %64 = tpu.matmul %62, %59, %cst_23 {dimension_numbers = #tpu.dot_dimension_numbers<[2], [1], [1], [2], [0, 0, 0, 1, 1, 2], [0], [0]>} : vector<1x16x128xbf16>, vector<1x128x128xbf16>, vector<1x16x128xf32> -> vector<1x16x128xf32>
    "tpu.trace_stop"() : () -> ()
    %65 = vector.broadcast %58 : vector<1x1x128xf32> to vector<1x16x128xf32>
    %66 = arith.mulf %64, %65 : vector<1x16x128xf32>
    %67 = arith.truncf %66 : vector<1x16x128xf32> to vector<1x16x128xbf16>
    "tpu.trace_start"() <{level = 10 : i32, message = "oc,bcm->bom"}> : () -> ()
    %cst_24 = arith.constant dense<0.000000e+00> : vector<1x128x16xf32>
    %68 = tpu.matmul %67, %63, %cst_24 {dimension_numbers = #tpu.dot_dimension_numbers<[1], [1], [0, 2], [0], [0, 0, 0, 2, 1, 0], [], []>} : vector<1x16x128xbf16>, vector<16x16xbf16>, vector<1x128x16xf32> -> vector<1x128x16xf32>
    %69 = tpu.transpose %68, [0, 2, 1] : vector<1x128x16xf32> -> vector<1x16x128xf32>
    "tpu.trace_stop"() : () -> ()
    %cst_25 = arith.constant 0.000000e+00 : f32
    %70 = vector.broadcast %cst_25 : f32 to vector<1x16x128xf32>
    %71 = arith.maximumf %69, %70 : vector<1x16x128xf32>
    %72 = arith.addf %71, %0 : vector<1x16x128xf32>
    %c0_26 = arith.constant 0 : index
    %c0_27 = arith.constant 0 : index
    %c0_28 = arith.constant 0 : index
    %73 = vector.load %arg7[%c0_26, %c0_27, %c0_28] : memref<1x16x128xf32, #tpu.memory_space<vmem>>, vector<1x16x128xf32>
    tpu.vector_store %arg7[%c0_26, %c0_27, %c0_28], %72 {strides = array<i32>} : memref<1x16x128xf32, #tpu.memory_space<vmem>>, vector<1x16x128xf32>,
    return
  }
  func.func @transform_0(%arg0: i32) -> (i32, i32, i32) {
    %c0_i32 = arith.constant 0 : i32
    %c0_i32_0 = arith.constant 0 : i32
    %c0_i32_1 = arith.constant 0 : i32
    return %arg0, %c0_i32, %c0_i32_0 : i32, i32, i32
  }
  func.func @transform_1(%arg0: i32) -> (i32, i32) {
    %c0_i32 = arith.constant 0 : i32
    %c0_i32_0 = arith.constant 0 : i32
    %c0_i32_1 = arith.constant 0 : i32
    return %c0_i32, %c0_i32_0 : i32, i32
  }
  func.func @transform_2(%arg0: i32) -> (i32, i32) {
    %c0_i32 = arith.constant 0 : i32
    %c0_i32_0 = arith.constant 0 : i32
    %c0_i32_1 = arith.constant 0 : i32
    return %c0_i32, %c0_i32_0 : i32, i32
  }
  func.func @transform_3(%arg0: i32) -> (i32, i32) {
    %c0_i32 = arith.constant 0 : i32
    %c0_i32_0 = arith.constant 0 : i32
    %c0_i32_1 = arith.constant 0 : i32
    return %c0_i32, %c0_i32_0 : i32, i32
  }
  func.func @transform_4(%arg0: i32) -> (i32, i32) {
    %c0_i32 = arith.constant 0 : i32
    %c0_i32_0 = arith.constant 0 : i32
    %c0_i32_1 = arith.constant 0 : i32
    return %c0_i32, %c0_i32_0 : i32, i32
  }
  func.func @transform_5(%arg0: i32) -> (i32, i32) {
    %c0_i32 = arith.constant 0 : i32
    %c0_i32_0 = arith.constant 0 : i32
    %c0_i32_1 = arith.constant 0 : i32
    return %c0_i32, %c0_i32_0 : i32, i32
  }
  func.func @transform_6(%arg0: i32) -> (i32, i32, i32) {
    %c0_i32 = arith.constant 0 : i32
    %c0_i32_0 = arith.constant 0 : i32
    %c0_i32_1 = arith.constant 0 : i32
    return %arg0, %c0_i32, %c0_i32_0 : i32, i32, i32
  }
}

</mosaic_0001>

<llo_original>
// kernel: tpu_custom_call.1
$region0: #{tpu_custom_call.1}
  #allocation0 [shape = 'u32[]', space=smem, size = 0x4, offset = 0x4, fixed_abs, tag = 'smem constant byte address 0x4 - core index']
  #allocation1 [shape = 'u32[144,128]{1,0:T(1,128)}', space=vmem, size = 0x12000, scoped, tag = 'internal scratch']
  %s0 = inlined_call_operand.vmem [shape: f32[2,16,128], index: 0, kind: input, shape index: {}]
  %s1 = inlined_call_operand.vmem [shape: f32[128,16], index: 1, kind: input, shape index: {}]
  %s2 = inlined_call_operand.vmem [shape: f32[128,1], index: 2, kind: input, shape index: {}]
  %s3 = inlined_call_operand.vmem [shape: f32[128,16], index: 3, kind: input, shape index: {}]
  %s4 = inlined_call_operand.vmem [shape: f32[128,1], index: 4, kind: input, shape index: {}]
  %s5 = inlined_call_operand.vmem [shape: f32[16,16], index: 5, kind: input, shape index: {}]
  %s6 = inlined_call_operand.hbm [shape: f32[2,16,128], index: 6, kind: output, shape index: {}]
  %s7 = sld [smem:[#allocation0]]
  $region57: #{tpu_custom_call.1} parent=0
    _
  %s9 = ssub.s32 1, %s7
  %s10 = scalar_select 0, %s9, %s7
  $region1: #{tpu_custom_call.1} parent=0
    #allocation2 [shape = 'u8[16384]{0}', space=vmem, size = 0x4000, scoped, tag = 'output window, operand 0']
    #allocation3 [shape = 's32[2]{0}', space=sflag, size = 0x8, scoped, tag = 'scoped memory for tpu_custom_call.1']
    %11 = vsyncpa [#allocation3], 0
    %s12 = scalar_lea.sflag [#allocation3], 1
    %13 = vsyncpa %s12, 0
    loop: start=0, step=1, limit=4
    $region2: #{tpu_custom_call.1} parent=1 // loop_pre_header
      _
    $region3: #{tpu_custom_call.1} parent=1 // loop_header
      %s15 = sphi 0, %s19
      %p16 = scmp.ge.s32.totalorder %s15, 4
      %s25 = sphi 0, %s27
      %s28 = sphi 0, %s25
      %s29 = sphi 0, %s28
      %s45 = sphi 0, %s29
      %s49 = sphi 0, %s49
      %s51 = sphi 0, %s49
      %s52 = sphi 0, %s51
      %s66 = sphi 0, %s52
      %s70 = sphi 0, %s70
      %s72 = sphi 0, %s70
      %s73 = sphi 0, %s72
      %s87 = sphi 0, %s73
      %s91 = sphi 0, %s91
      %s93 = sphi 0, %s91
      %s94 = sphi 0, %s93
      %s108 = sphi 0, %s94
      %s112 = sphi 0, %s112
      %s114 = sphi 0, %s112
      %s115 = sphi 0, %s114
      %s129 = sphi 0, %s115
      %s133 = sphi 0, %s133
      %s135 = sphi 0, %s133
      %s136 = sphi 0, %s135
      %s150 = sphi 0, %s136
      %s156 = sphi 0, %s158
      %s159 = sphi 0, %s156
      %s160 = sphi 0, %s159
      %s176 = sphi 0, %s160
    $region4: #{tpu_custom_call.1} parent=1 // loop_header_branch
      %18 = sbr.rel (%p16) target = $region8
    $region5: #{tpu_custom_call.1} parent=1 // loop_body
      %s20 = ssub.s32 %s15, 1
      %s21 = ssub.s32 %s15, 2
      %s22 = sadd.s32 %s15, 1
      %s23 = ssub.s32 %s15, %s22
      %p24 = scmp.eq.s32.totalorder %s23, 0
      %s26 = sadd.s32 %s25, 1
      %s27 = scalar_select %p24, %s25, %s26
      %p30 = pneg %p24
      %p31 = scmp.eq.s32.totalorder %s15, 1
      %p32 = por %p30, %p31
      %p33 = scmp.ne.s32.totalorder %s25, %s28
      %p34 = scmp.eq.s32.totalorder %s15, 0
      %p35 = por %p33, %p34
      %p36 = scmp.ne.s32.totalorder %s25, %s28
      %p37 = scmp.eq.s32.totalorder %s20, 1
      %p38 = por %p36, %p37
      %p39 = scmp.ne.s32.totalorder %s28, %s29
      %p40 = scmp.eq.s32.totalorder %s20, 0
      %p41 = por %p39, %p40
      %p42 = scmp.ne.s32.totalorder %s28, %s29
      %p43 = scmp.eq.s32.totalorder %s21, 1
      %p44 = por %p42, %p43
      %p46 = scmp.ne.s32.totalorder %s29, %s45
      %p47 = scmp.eq.s32.totalorder %s21, 0
      %p48 = por %p46, %p47
      %s50 = sadd.s32 %s49, 1
      %p53 = scmp.eq.s32.totalorder %s15, 1
      %p54 = scmp.ne.s32.totalorder %s49, %s51
      %p55 = scmp.eq.s32.totalorder %s15, 0
      %p56 = por %p54, %p55
      %p57 = scmp.ne.s32.totalorder %s49, %s51
      %p58 = scmp.eq.s32.totalorder %s20, 1
      %p59 = por %p57, %p58
      %p60 = scmp.ne.s32.totalorder %s51, %s52
      %p61 = scmp.eq.s32.totalorder %s20, 0
      %p62 = por %p60, %p61
      %p63 = scmp.ne.s32.totalorder %s51, %s52
      %p64 = scmp.eq.s32.totalorder %s21, 1
      %p65 = por %p63, %p64
      %p67 = scmp.ne.s32.totalorder %s52, %s66
      %p68 = scmp.eq.s32.totalorder %s21, 0
      %p69 = por %p67, %p68
      %s71 = sadd.s32 %s70, 1
      %p74 = scmp.eq.s32.totalorder %s15, 1
      %p75 = scmp.ne.s32.totalorder %s70, %s72
      %p76 = scmp.eq.s32.totalorder %s15, 0
      %p77 = por %p75, %p76
      %p78 = scmp.ne.s32.totalorder %s70, %s72
      %p79 = scmp.eq.s32.totalorder %s20, 1
      %p80 = por %p78, %p79
      %p81 = scmp.ne.s32.totalorder %s72, %s73
      %p82 = scmp.eq.s32.totalorder %s20, 0
      %p83 = por %p81, %p82
      %p84 = scmp.ne.s32.totalorder %s72, %s73
      %p85 = scmp.eq.s32.totalorder %s21, 1
      %p86 = por %p84, %p85
      %p88 = scmp.ne.s32.totalorder %s73, %s87
      %p89 = scmp.eq.s32.totalorder %s21, 0
      %p90 = por %p88, %p89
      %s92 = sadd.s32 %s91, 1
      %p95 = scmp.eq.s32.totalorder %s15, 1
      %p96 = scmp.ne.s32.totalorder %s91, %s93
      %p97 = scmp.eq.s32.totalorder %s15, 0
      %p98 = por %p96, %p97
      %p99 = scmp.ne.s32.totalorder %s91, %s93
      %p100 = scmp.eq.s32.totalorder %s20, 1
      %p101 = por %p99, %p100
      %p102 = scmp.ne.s32.totalorder %s93, %s94
      %p103 = scmp.eq.s32.totalorder %s20, 0
      %p104 = por %p102, %p103
      %p105 = scmp.ne.s32.totalorder %s93, %s94
      %p106 = scmp.eq.s32.totalorder %s21, 1
      %p107 = por %p105, %p106
      %p109 = scmp.ne.s32.totalorder %s94, %s108
      %p110 = scmp.eq.s32.totalorder %s21, 0
      %p111 = por %p109, %p110
      %s113 = sadd.s32 %s112, 1
      %p116 = scmp.eq.s32.totalorder %s15, 1
      %p117 = scmp.ne.s32.totalorder %s112, %s114
      %p118 = scmp.eq.s32.totalorder %s15, 0
      %p119 = por %p117, %p118
      %p120 = scmp.ne.s32.totalorder %s112, %s114
      %p121 = scmp.eq.s32.totalorder %s20, 1
      %p122 = por %p120, %p121
      %p123 = scmp.ne.s32.totalorder %s114, %s115
      %p124 = scmp.eq.s32.totalorder %s20, 0
      %p125 = por %p123, %p124
      %p126 = scmp.ne.s32.totalorder %s114, %s115
      %p127 = scmp.eq.s32.totalorder %s21, 1
      %p128 = por %p126, %p127
      %p130 = scmp.ne.s32.totalorder %s115, %s129
      %p131 = scmp.eq.s32.totalorder %s21, 0
      %p132 = por %p130, %p131
      %s134 = sadd.s32 %s133, 1
      %p137 = scmp.eq.s32.totalorder %s15, 1
      %p138 = scmp.ne.s32.totalorder %s133, %s135
      %p139 = scmp.eq.s32.totalorder %s15, 0
      %p140 = por %p138, %p139
      %p141 = scmp.ne.s32.totalorder %s133, %s135
      %p142 = scmp.eq.s32.totalorder %s20, 1
      %p143 = por %p141, %p142
      %p144 = scmp.ne.s32.totalorder %s135, %s136
      %p145 = scmp.eq.s32.totalorder %s20, 0
      %p146 = por %p144, %p145
      %p147 = scmp.ne.s32.totalorder %s135, %s136
      %p148 = scmp.eq.s32.totalorder %s21, 1
      %p149 = por %p147, %p148
      %p151 = scmp.ne.s32.totalorder %s136, %s150
      %p152 = scmp.eq.s32.totalorder %s21, 0
      %p153 = por %p151, %p152
      %s154 = ssub.s32 %s15, %s22
      %p155 = scmp.eq.s32.totalorder %s154, 0
      %s157 = sadd.s32 %s156, 1
      %s158 = scalar_select %p155, %s156, %s157
      %p161 = pneg %p155
      %p162 = scmp.eq.s32.totalorder %s15, 1
      %p163 = por %p161, %p162
      %p164 = scmp.ne.s32.totalorder %s156, %s159
      %p165 = scmp.eq.s32.totalorder %s15, 0
      %p166 = por %p164, %p165
      %p167 = scmp.ne.s32.totalorder %s156, %s159
      %p168 = scmp.eq.s32.totalorder %s20, 1
      %p169 = por %p167, %p168
      %p170 = scmp.ne.s32.totalorder %s159, %s160
      %p171 = scmp.eq.s32.totalorder %s20, 0
      %p172 = por %p170, %p171
      %p173 = scmp.ne.s32.totalorder %s159, %s160
      %p174 = scmp.eq.s32.totalorder %s21, 1
      %p175 = por %p173, %p174
      %p177 = scmp.ne.s32.totalorder %s160, %s176
      %p178 = scmp.eq.s32.totalorder %s21, 0
      %p179 = por %p177, %p178
      %p180 = scmp.le.s32.totalorder 1, %s15
      %p181 = scmp.lt.s32.totalorder %s15, 3
      %p182 = pnand %p180, %p181
      %p183 = pneg %p182
      // Predicated region
      $region9: #{tpu_custom_call.1} parent=5 // pred_check
        _
      $region10: #{tpu_custom_call.1} parent=5 // pred_check_branch
        %185 = sbr.rel (%p182) target = $region12
      $region11: #{tpu_custom_call.1} parent=5 // pred_region
        %s186 = ssub.s32 %s15, 1
        // Predicated region
        $region13: #{tpu_custom_call.1} parent=11 // pred_check
          %p187 = pneg %p62
        $region14: #{tpu_custom_call.1} parent=11 // pred_check_branch
          %189 = sbr.rel (%p187) target = $region16
        $region15: #{tpu_custom_call.1} parent=11 // pred_region
          _
        $region16: #{tpu_custom_call.1} parent=11 // pred_fallthru
          _
        // Predicated region
        $region17: #{tpu_custom_call.1} parent=11 // pred_check
          %p190 = pneg %p83
        $region18: #{tpu_custom_call.1} parent=11 // pred_check_branch
          %192 = sbr.rel (%p190) target = $region20
        $region19: #{tpu_custom_call.1} parent=11 // pred_region
          _
        $region20: #{tpu_custom_call.1} parent=11 // pred_fallthru
          _
        // Predicated region
        $region21: #{tpu_custom_call.1} parent=11 // pred_check
          %p193 = pneg %p104
        $region22: #{tpu_custom_call.1} parent=11 // pred_check_branch
          %195 = sbr.rel (%p193) target = $region24
        $region23: #{tpu_custom_call.1} parent=11 // pred_region
          _
        $region24: #{tpu_custom_call.1} parent=11 // pred_fallthru
          _
        // Predicated region
        $region25: #{tpu_custom_call.1} parent=11 // pred_check
          %p196 = pneg %p125
        $region26: #{tpu_custom_call.1} parent=11 // pred_check_branch
          %198 = sbr.rel (%p196) target = $region28
        $region27: #{tpu_custom_call.1} parent=11 // pred_region
          _
        $region28: #{tpu_custom_call.1} parent=11 // pred_fallthru
          _
        // Predicated region
        $region29: #{tpu_custom_call.1} parent=11 // pred_check
          %p199 = pneg %p146
        $region30: #{tpu_custom_call.1} parent=11 // pred_check_branch
          %201 = sbr.rel (%p199) target = $region32
        $region31: #{tpu_custom_call.1} parent=11 // pred_region
          _
        $region32: #{tpu_custom_call.1} parent=11 // pred_fallthru
          _
      $region12: #{tpu_custom_call.1} parent=5 // pred_fallthru
        _
      %p202 = scmp.lt.s32.totalorder %s15, 2
      // Predicated region
      $region33: #{tpu_custom_call.1} parent=5 // pred_check
        %p203 = pneg %p202
      $region34: #{tpu_custom_call.1} parent=5 // pred_check_branch
        %205 = sbr.rel (%p203) target = $region36
      $region35: #{tpu_custom_call.1} parent=5 // pred_region
        // Predicated region
        $region37: #{tpu_custom_call.1} parent=35 // pred_check
          %p206 = pneg %p35
        $region38: #{tpu_custom_call.1} parent=35 // pred_check_branch
          %208 = sbr.rel (%p206) target = $region40
        $region39: #{tpu_custom_call.1} parent=35 // pred_region
          %p209 = scmp.lt.s32.totalorder %s15, 1
          %s210 = scalar_select %p209, %s15, 1
          %s211 = smul.addr %s210, 2
          %s212 = smul.addr %s211, 8
          %s213 = scalar_lea.vmem %s0, %s212
        $region40: #{tpu_custom_call.1} parent=35 // pred_fallthru
          _
      $region36: #{tpu_custom_call.1} parent=5 // pred_fallthru
        _
      %p214 = scmp.le.s32.totalorder 1, %s15
      %p215 = scmp.lt.s32.totalorder %s15, 3
      %p216 = pnand %p214, %p215
      %p217 = pneg %p216
      // Predicated region
      $region41: #{tpu_custom_call.1} parent=5 // pred_check
        _
      $region42: #{tpu_custom_call.1} parent=5 // pred_check_branch
        %219 = sbr.rel (%p216) target = $region44
      $region43: #{tpu_custom_call.1} parent=5 // pred_region
        %s220 = ssub.s32 %s15, 1
        %p221 = scmp.lt.s32.totalorder %s20, 1
        %s222 = scalar_select %p221, %s20, 1
        %s223 = smul.addr %s222, 2
        %s224 = smul.addr %s223, 8
        %s225 = scalar_lea.vmem %s0, %s224
        %p226 = pneg %p41
        %p227 = pneg %p38
        %p228 = pneg %p62
        %p229 = pneg %p59
        %p230 = pneg %p83
        %p231 = pneg %p80
        %p232 = pneg %p104
        %p233 = pneg %p101
        %p234 = pneg %p125
        %p235 = pneg %p122
        %p236 = pneg %p146
        %p237 = pneg %p143
        %p238 = pneg %p172
        %p239 = pneg %p169
        %s240 = sand.u32 %s159, 1
        %s241 = scalar_lea.sflag [#allocation3], %s240
        %s242 = sand.u32 %s159, 1
        %s243 = smul.addr %s242, 16
        %s244 = scalar_lea.vmem [#allocation2], %s243
        %p245 = scmp.lt.s32.totalorder %s20, 1
        %s246 = scalar_select %p245, %s20, 1
        %s247 = smul.addr %s246, 2
        %s248 = smul.addr %s247, 8
        %s249 = scalar_lea.vmem %s0, %s248
        %v251 = vld [vmem:[%s249] sm:$0xff]
        %v252 = vld [vmem:[%s249 + $0x8] sm:$0xff]
        %v253 = vld [vmem:[%s1] sm:$0xff]
        %v254 = vld [vmem:[%s1 + $0x8] sm:$0xff]
        %v255 = vld [vmem:[%s1 + $0x10] sm:$0xff]
        %v256 = vld [vmem:[%s1 + $0x18] sm:$0xff]
        %v257 = vld [vmem:[%s1 + $0x20] sm:$0xff]
        %v258 = vld [vmem:[%s1 + $0x28] sm:$0xff]
        %v259 = vld [vmem:[%s1 + $0x30] sm:$0xff]
        %v260 = vld [vmem:[%s1 + $0x38] sm:$0xff]
        %v261 = vld [vmem:[%s1 + $0x40] sm:$0xff]
        %v262 = vld [vmem:[%s1 + $0x48] sm:$0xff]
        %v263 = vld [vmem:[%s1 + $0x50] sm:$0xff]
        %v264 = vld [vmem:[%s1 + $0x58] sm:$0xff]
        %v265 = vld [vmem:[%s1 + $0x60] sm:$0xff]
        %v266 = vld [vmem:[%s1 + $0x68] sm:$0xff]
        %v267 = vld [vmem:[%s1 + $0x70] sm:$0xff]
        %v268 = vld [vmem:[%s1 + $0x78] sm:$0xff]
        %v269 = vld [vmem:[%s2] sm:$0xff]
        %v270 = vld [vmem:[%s2 + $0x8] sm:$0xff]
        %v271 = vld [vmem:[%s2 + $0x10] sm:$0xff]
        %v272 = vld [vmem:[%s2 + $0x18] sm:$0xff]
        %v273 = vld [vmem:[%s2 + $0x20] sm:$0xff]
        %v274 = vld [vmem:[%s2 + $0x28] sm:$0xff]
        %v275 = vld [vmem:[%s2 + $0x30] sm:$0xff]
        %v276 = vld [vmem:[%s2 + $0x38] sm:$0xff]
        %v277 = vld [vmem:[%s2 + $0x40] sm:$0xff]
        %v278 = vld [vmem:[%s2 + $0x48] sm:$0xff]
        %v279 = vld [vmem:[%s2 + $0x50] sm:$0xff]
        %v280 = vld [vmem:[%s2 + $0x58] sm:$0xff]
        %v281 = vld [vmem:[%s2 + $0x60] sm:$0xff]
        %v282 = vld [vmem:[%s2 + $0x68] sm:$0xff]
        %v283 = vld [vmem:[%s2 + $0x70] sm:$0xff]
        %v284 = vld [vmem:[%s2 + $0x78] sm:$0xff]
        %v285 = vld [vmem:[%s3] sm:$0xff]
        %v286 = vld [vmem:[%s3 + $0x8] sm:$0xff]
        %v287 = vld [vmem:[%s3 + $0x10] sm:$0xff]
        %v288 = vld [vmem:[%s3 + $0x18] sm:$0xff]
        %v289 = vld [vmem:[%s3 + $0x20] sm:$0xff]
        %v290 = vld [vmem:[%s3 + $0x28] sm:$0xff]
        %v291 = vld [vmem:[%s3 + $0x30] sm:$0xff]
        %v292 = vld [vmem:[%s3 + $0x38] sm:$0xff]
        %v293 = vld [vmem:[%s3 + $0x40] sm:$0xff]
        %v294 = vld [vmem:[%s3 + $0x48] sm:$0xff]
        %v295 = vld [vmem:[%s3 + $0x50] sm:$0xff]
        %v296 = vld [vmem:[%s3 + $0x58] sm:$0xff]
        %v297 = vld [vmem:[%s3 + $0x60] sm:$0xff]
        %v298 = vld [vmem:[%s3 + $0x68] sm:$0xff]
        %v299 = vld [vmem:[%s3 + $0x70] sm:$0xff]
        %v300 = vld [vmem:[%s3 + $0x78] sm:$0xff]
        %v301 = vld [vmem:[%s4] sm:$0xff]
        %v302 = vld [vmem:[%s4 + $0x8] sm:$0xff]
        %v303 = vld [vmem:[%s4 + $0x10] sm:$0xff]
        %v304 = vld [vmem:[%s4 + $0x18] sm:$0xff]
        %v305 = vld [vmem:[%s4 + $0x20] sm:$0xff]
        %v306 = vld [vmem:[%s4 + $0x28] sm:$0xff]
        %v307 = vld [vmem:[%s4 + $0x30] sm:$0xff]
        %v308 = vld [vmem:[%s4 + $0x38] sm:$0xff]
        %v309 = vld [vmem:[%s4 + $0x40] sm:$0xff]
        %v310 = vld [vmem:[%s4 + $0x48] sm:$0xff]
        %v311 = vld [vmem:[%s4 + $0x50] sm:$0xff]
        %v312 = vld [vmem:[%s4 + $0x58] sm:$0xff]
        %v313 = vld [vmem:[%s4 + $0x60] sm:$0xff]
        %v314 = vld [vmem:[%s4 + $0x68] sm:$0xff]
        %v315 = vld [vmem:[%s4 + $0x70] sm:$0xff]
        %v316 = vld [vmem:[%s4 + $0x78] sm:$0xff]
        %v317 = vld [vmem:[%s5] sm:$0xff]
        %v318 = vld [vmem:[%s5 + $0x8] sm:$0xff]
        %319 = vxpose.xlu0.b32.start [1/16] %v251, 128
        %320 = vxpose.xlu0.b32.cont [2/16] %v252, 128
        %321 = vxpose.xlu0.b32.cont [3/16] 0.0, 128
        %322 = vxpose.xlu0.b32.cont [4/16] 0.0, 128
        %323 = vxpose.xlu0.b32.cont [5/16] 0.0, 128
        %324 = vxpose.xlu0.b32.cont [6/16] 0.0, 128
        %325 = vxpose.xlu0.b32.cont [7/16] 0.0, 128
        %326 = vxpose.xlu0.b32.cont [8/16] 0.0, 128
        %327 = vxpose.xlu0.b32.cont [9/16] 0.0, 128
        %328 = vxpose.xlu0.b32.cont [10/16] 0.0, 128
        %329 = vxpose.xlu0.b32.cont [11/16] 0.0, 128
        %330 = vxpose.xlu0.b32.cont [12/16] 0.0, 128
        %331 = vxpose.xlu0.b32.cont [13/16] 0.0, 128
        %332 = vxpose.xlu0.b32.cont [14/16] 0.0, 128
        %333 = vxpose.xlu0.b32.cont [15/16] 0.0, 128
        %334 = vxpose.xlu0.b32.end [16/16] 0.0, 128
        %v335 = vpop.trf.xlu0
        %v336 = vpop.trf.xlu0
        %v337 = vpop.trf.xlu0
        %v338 = vpop.trf.xlu0
        %v339 = vpop.trf.xlu0
        %v340 = vpop.trf.xlu0
        %v341 = vpop.trf.xlu0
        %v342 = vpop.trf.xlu0
        %v343 = vpop.trf.xlu0
        %v344 = vpop.trf.xlu0
        %v345 = vpop.trf.xlu0
        %v346 = vpop.trf.xlu0
        %v347 = vpop.trf.xlu0
        %v348 = vpop.trf.xlu0
        %v349 = vpop.trf.xlu0
        %v350 = vpop.trf.xlu0
        %vm351 = vcmask 130048
        %v353 = vsel %vm351, %v335, 0
        %v356 = vsel %vm351, %v336, 0
        %v359 = vsel %vm351, %v337, 0
        %v362 = vsel %vm351, %v338, 0
        %v365 = vsel %vm351, %v339, 0
        %v368 = vsel %vm351, %v340, 0
        %v371 = vsel %vm351, %v341, 0
        %v374 = vsel %vm351, %v342, 0
        %v377 = vsel %vm351, %v343, 0
        %v380 = vsel %vm351, %v344, 0
        %v383 = vsel %vm351, %v345, 0
        %v386 = vsel %vm351, %v346, 0
        %v389 = vsel %vm351, %v347, 0
        %v392 = vsel %vm351, %v348, 0
        %v395 = vsel %vm351, %v349, 0
        %v398 = vsel %vm351, %v350, 0
        %v401 = vsel %vm351, %v253, 0
        %v404 = vsel %vm351, %v254, 0
        %v407 = vsel %vm351, %v255, 0
        %v410 = vsel %vm351, %v256, 0
        %v413 = vsel %vm351, %v257, 0
        %v416 = vsel %vm351, %v258, 0
        %v419 = vsel %vm351, %v259, 0
        %v422 = vsel %vm351, %v260, 0
        %v425 = vsel %vm351, %v261, 0
        %v428 = vsel %vm351, %v262, 0
        %v431 = vsel %vm351, %v263, 0
        %v434 = vsel %vm351, %v264, 0
        %v437 = vsel %vm351, %v265, 0
        %v440 = vsel %vm351, %v266, 0
        %v443 = vsel %vm351, %v267, 0
        %v446 = vsel %vm351, %v268, 0
        %448 = vmatprep.subr.mxu0 0.0
        %449 = vmatpush1.xpose.msra.mxu0 %v446
        %450 = vmatprep.subr.mxu0 0.0
        %451 = vmatpush1.xpose.msra.mxu0 %v443
        %452 = vmatprep.subr.mxu0 0.0
        %453 = vmatpush1.xpose.msra.mxu0 %v440
        %454 = vmatprep.subr.mxu0 0.0
        %455 = vmatpush1.xpose.msra.mxu0 %v437
        %456 = vmatprep.subr.mxu0 0.0
        %457 = vmatpush1.xpose.msra.mxu0 %v434
        %458 = vmatprep.subr.mxu0 0.0
        %459 = vmatpush1.xpose.msra.mxu0 %v431
        %460 = vmatprep.subr.mxu0 0.0
        %461 = vmatpush1.xpose.msra.mxu0 %v428
        %462 = vmatprep.subr.mxu0 0.0
        %463 = vmatpush1.xpose.msra.mxu0 %v425
        %464 = vmatprep.subr.mxu0 0.0
        %465 = vmatpush1.xpose.msra.mxu0 %v422
        %466 = vmatprep.subr.mxu0 0.0
        %467 = vmatpush1.xpose.msra.mxu0 %v419
        %468 = vmatprep.subr.mxu0 0.0
        %469 = vmatpush1.xpose.msra.mxu0 %v416
        %470 = vmatprep.subr.mxu0 0.0
        %471 = vmatpush1.xpose.msra.mxu0 %v413
        %472 = vmatprep.subr.mxu0 0.0
        %473 = vmatpush1.xpose.msra.mxu0 %v410
        %474 = vmatprep.subr.mxu0 0.0
        %475 = vmatpush1.xpose.msra.mxu0 %v407
        %476 = vmatprep.subr.mxu0 0.0
        %477 = vmatpush1.xpose.msra.mxu0 %v404
        %478 = vmatprep.subr.mxu0 0.0
        %479 = vmatpush1.xpose.msra.mxu0 %v401
        %480 = vmatprep.subr.mxu0 0.0
        %481 = vmatpush2.xpose.msra.mxu0 0.0
        %482 = vmatprep.subr.mxu0 0.0
        %483 = vmatpush2.xpose.msra.mxu0 0.0
        %484 = vmatprep.subr.mxu0 0.0
        %485 = vmatpush2.xpose.msra.mxu0 0.0
        %486 = vmatprep.subr.mxu0 0.0
        %487 = vmatpush2.xpose.msra.mxu0 0.0
        %488 = vmatprep.subr.mxu0 0.0
        %489 = vmatpush2.xpose.msra.mxu0 0.0
        %490 = vmatprep.subr.mxu0 0.0
        %491 = vmatpush2.xpose.msra.mxu0 0.0
        %492 = vmatprep.subr.mxu0 0.0
        %493 = vmatpush2.xpose.msra.mxu0 0.0
        %494 = vmatprep.subr.mxu0 0.0
        %495 = vmatpush2.xpose.msra.mxu0 0.0
        %496 = vmatprep.subr.mxu0 0.0
        %497 = vmatpush2.xpose.msra.mxu0 0.0
        %498 = vmatprep.subr.mxu0 0.0
        %499 = vmatpush2.xpose.msra.mxu0 0.0
        %500 = vmatprep.subr.mxu0 0.0
        %501 = vmatpush2.xpose.msra.mxu0 0.0
        %502 = vmatprep.subr.mxu0 0.0
        %503 = vmatpush2.xpose.msra.mxu0 0.0
        %504 = vmatprep.subr.mxu0 0.0
        %505 = vmatpush2.xpose.msra.mxu0 0.0
        %506 = vmatprep.subr.mxu0 0.0
        %507 = vmatpush2.xpose.msra.mxu0 0.0
        %508 = vmatprep.subr.mxu0 0.0
        %509 = vmatpush2.xpose.msra.mxu0 0.0
        %510 = vmatprep.subr.mxu0 0.0
        %511 = vmatpush2.xpose.msra.mxu0 0.0
        %512 = vmatprep.mubr.f32.mxu0 0.0
        %513 = vmatmul.mubr.f32.gmra.mxu0 %v353
        %v514 = vpop.f32.mrf.mxu0
        %v515 = vadd.f32 0.0, %v514
        %v516 = vpop.f32.mrf.mxu0
        %517 = vmatprep.mubr.f32.mxu0 0.0
        %518 = vmatmul.mubr.f32.gmra.mxu0 %v356
        %v519 = vpop.f32.mrf.mxu0
        %v520 = vadd.f32 0.0, %v519
        %v521 = vpop.f32.mrf.mxu0
        %522 = vmatprep.mubr.f32.mxu0 0.0
        %523 = vmatmul.mubr.f32.gmra.mxu0 %v359
        %v524 = vpop.f32.mrf.mxu0
        %v525 = vadd.f32 0.0, %v524
        %v526 = vpop.f32.mrf.mxu0
        %527 = vmatprep.mubr.f32.mxu0 0.0
        %528 = vmatmul.mubr.f32.gmra.mxu0 %v362
        %v529 = vpop.f32.mrf.mxu0
        %v530 = vadd.f32 0.0, %v529
        %v531 = vpop.f32.mrf.mxu0
        %532 = vmatprep.mubr.f32.mxu0 0.0
        %533 = vmatmul.mubr.f32.gmra.mxu0 %v365
        %v534 = vpop.f32.mrf.mxu0
        %v535 = vadd.f32 0.0, %v534
        %v536 = vpop.f32.mrf.mxu0
        %537 = vmatprep.mubr.f32.mxu0 0.0
        %538 = vmatmul.mubr.f32.gmra.mxu0 %v368
        %v539 = vpop.f32.mrf.mxu0
        %v540 = vadd.f32 0.0, %v539
        %v541 = vpop.f32.mrf.mxu0
        %542 = vmatprep.mubr.f32.mxu0 0.0
        %543 = vmatmul.mubr.f32.gmra.mxu0 %v371
        %v544 = vpop.f32.mrf.mxu0
        %v545 = vadd.f32 0.0, %v544
        %v546 = vpop.f32.mrf.mxu0
        %547 = vmatprep.mubr.f32.mxu0 0.0
        %548 = vmatmul.mubr.f32.gmra.mxu0 %v374
        %v549 = vpop.f32.mrf.mxu0
        %v550 = vadd.f32 0.0, %v549
        %v551 = vpop.f32.mrf.mxu0
        %552 = vmatprep.mubr.f32.mxu0 0.0
        %553 = vmatmul.mubr.f32.gmra.mxu0 %v377
        %v554 = vpop.f32.mrf.mxu0
        %v555 = vadd.f32 0.0, %v554
        %v556 = vpop.f32.mrf.mxu0
        %557 = vmatprep.mubr.f32.mxu0 0.0
        %558 = vmatmul.mubr.f32.gmra.mxu0 %v380
        %v559 = vpop.f32.mrf.mxu0
        %v560 = vadd.f32 0.0, %v559
        %v561 = vpop.f32.mrf.mxu0
        %562 = vmatprep.mubr.f32.mxu0 0.0
        %563 = vmatmul.mubr.f32.gmra.mxu0 %v383
        %v564 = vpop.f32.mrf.mxu0
        %v565 = vadd.f32 0.0, %v564
        %v566 = vpop.f32.mrf.mxu0
        %567 = vmatprep.mubr.f32.mxu0 0.0
        %568 = vmatmul.mubr.f32.gmra.mxu0 %v386
        %v569 = vpop.f32.mrf.mxu0
        %v570 = vadd.f32 0.0, %v569
        %v571 = vpop.f32.mrf.mxu0
        %572 = vmatprep.mubr.f32.mxu0 0.0
        %573 = vmatmul.mubr.f32.gmra.mxu0 %v389
        %v574 = vpop.f32.mrf.mxu0
        %v575 = vadd.f32 0.0, %v574
        %v576 = vpop.f32.mrf.mxu0
        %577 = vmatprep.mubr.f32.mxu0 0.0
        %578 = vmatmul.mubr.f32.gmra.mxu0 %v392
        %v579 = vpop.f32.mrf.mxu0
        %v580 = vadd.f32 0.0, %v579
        %v581 = vpop.f32.mrf.mxu0
        %582 = vmatprep.mubr.f32.mxu0 0.0
        %583 = vmatmul.mubr.f32.gmra.mxu0 %v395
        %v584 = vpop.f32.mrf.mxu0
        %v585 = vadd.f32 0.0, %v584
        %v586 = vpop.f32.mrf.mxu0
        %587 = vmatprep.mubr.f32.mxu0 0.0
        %588 = vmatmul.mubr.f32.gmra.mxu0 %v398
        %v589 = vpop.f32.mrf.mxu0
        %v590 = vadd.f32 0.0, %v589
        %v591 = vpop.f32.mrf.mxu0
        %592 = vdwg.mxu0
        %593 = vxpose.xlu0.b32.start [1/16] %v515, 128
        %594 = vxpose.xlu0.b32.cont [2/16] %v520, 128
        %595 = vxpose.xlu0.b32.cont [3/16] %v525, 128
        %596 = vxpose.xlu0.b32.cont [4/16] %v530, 128
        %597 = vxpose.xlu0.b32.cont [5/16] %v535, 128
        %598 = vxpose.xlu0.b32.cont [6/16] %v540, 128
        %599 = vxpose.xlu0.b32.cont [7/16] %v545, 128
        %600 = vxpose.xlu0.b32.cont [8/16] %v550, 128
        %601 = vxpose.xlu0.b32.cont [9/16] %v555, 128
        %602 = vxpose.xlu0.b32.cont [10/16] %v560, 128
        %603 = vxpose.xlu0.b32.cont [11/16] %v565, 128
        %604 = vxpose.xlu0.b32.cont [12/16] %v570, 128
        %605 = vxpose.xlu0.b32.cont [13/16] %v575, 128
        %606 = vxpose.xlu0.b32.cont [14/16] %v580, 128
        %607 = vxpose.xlu0.b32.cont [15/16] %v585, 128
        %608 = vxpose.xlu0.b32.end [16/16] %v590, 128
        %v609 = vpop.trf.xlu0
        %v610 = vpop.trf.xlu0
        %v611 = vpop.trf.xlu0
        %v612 = vpop.trf.xlu0
        %v613 = vpop.trf.xlu0
        %v614 = vpop.trf.xlu0
        %v615 = vpop.trf.xlu0
        %v616 = vpop.trf.xlu0
        %v617 = vpop.trf.xlu0
        %v618 = vpop.trf.xlu0
        %v619 = vpop.trf.xlu0
        %v620 = vpop.trf.xlu0
        %v621 = vpop.trf.xlu0
        %v622 = vpop.trf.xlu0
        %v623 = vpop.trf.xlu0
        %v624 = vpop.trf.xlu0
        %626 = vset.pattern.permute.xlu0 0
        %627 = vperm.xlu0 %626, %v269
        %v628 = vpop.permute.xlu0 %627
        %631 = vset.pattern.permute.xlu0 0
        %632 = vperm.xlu0 %631, %v270
        %v633 = vpop.permute.xlu0 %632
        %636 = vset.pattern.permute.xlu0 0
        %637 = vperm.xlu0 %636, %v271
        %v638 = vpop.permute.xlu0 %637
        %641 = vset.pattern.permute.xlu0 0
        %642 = vperm.xlu0 %641, %v272
        %v643 = vpop.permute.xlu0 %642
        %646 = vset.pattern.permute.xlu0 0
        %647 = vperm.xlu0 %646, %v273
        %v648 = vpop.permute.xlu0 %647
        %651 = vset.pattern.permute.xlu0 0
        %652 = vperm.xlu0 %651, %v274
        %v653 = vpop.permute.xlu0 %652
        %656 = vset.pattern.permute.xlu0 0
        %657 = vperm.xlu0 %656, %v275
        %v658 = vpop.permute.xlu0 %657
        %661 = vset.pattern.permute.xlu0 0
        %662 = vperm.xlu0 %661, %v276
        %v663 = vpop.permute.xlu0 %662
        %666 = vset.pattern.permute.xlu0 0
        %667 = vperm.xlu0 %666, %v277
        %v668 = vpop.permute.xlu0 %667
        %671 = vset.pattern.permute.xlu0 0
        %672 = vperm.xlu0 %671, %v278
        %v673 = vpop.permute.xlu0 %672
        %676 = vset.pattern.permute.xlu0 0
        %677 = vperm.xlu0 %676, %v279
        %v678 = vpop.permute.xlu0 %677
        %681 = vset.pattern.permute.xlu0 0
        %682 = vperm.xlu0 %681, %v280
        %v683 = vpop.permute.xlu0 %682
        %686 = vset.pattern.permute.xlu0 0
        %687 = vperm.xlu0 %686, %v281
        %v688 = vpop.permute.xlu0 %687
        %691 = vset.pattern.permute.xlu0 0
        %692 = vperm.xlu0 %691, %v282
        %v693 = vpop.permute.xlu0 %692
        %696 = vset.pattern.permute.xlu0 0
        %697 = vperm.xlu0 %696, %v283
        %v698 = vpop.permute.xlu0 %697
        %701 = vset.pattern.permute.xlu0 0
        %702 = vperm.xlu0 %701, %v284
        %v703 = vpop.permute.xlu0 %702
        %v705 = vadd.f32 %v609, %v628
        %v706 = vadd.f32 %v610, %v633
        %v707 = vadd.f32 %v611, %v638
        %v708 = vadd.f32 %v612, %v643
        %v709 = vadd.f32 %v613, %v648
        %v710 = vadd.f32 %v614, %v653
        %v711 = vadd.f32 %v615, %v658
        %v712 = vadd.f32 %v616, %v663
        %v713 = vadd.f32 %v617, %v668
        %v714 = vadd.f32 %v618, %v673
        %v715 = vadd.f32 %v619, %v678
        %v716 = vadd.f32 %v620, %v683
        %v717 = vadd.f32 %v621, %v688
        %v718 = vadd.f32 %v622, %v693
        %v719 = vadd.f32 %v623, %v698
        %v720 = vadd.f32 %v624, %v703
        %v721 = vlaneseq
        %v722 = vand.u32 %v721, 127
        %vm723 = vcmp.lt.s32.totalorder %v722, 16
        %v724 = vsel %vm723, 1, 0
        %vm725 = vcmp.eq.s32.totalorder %v724, 1
        %v726 = vsel %vm725, %v705, 0.0
        %v727 = vsel %vm725, %v706, 0.0
        %v728 = vsel %vm725, %v707, 0.0
        %v729 = vsel %vm725, %v708, 0.0
        %v730 = vsel %vm725, %v709, 0.0
        %v731 = vsel %vm725, %v710, 0.0
        %v732 = vsel %vm725, %v711, 0.0
        %v733 = vsel %vm725, %v712, 0.0
        %v734 = vsel %vm725, %v713, 0.0
        %v735 = vsel %vm725, %v714, 0.0
        %v736 = vsel %vm725, %v715, 0.0
        %v737 = vsel %vm725, %v716, 0.0
        %v738 = vsel %vm725, %v717, 0.0
        %v739 = vsel %vm725, %v718, 0.0
        %v740 = vsel %vm725, %v719, 0.0
        %v741 = vsel %vm725, %v720, 0.0
        %742 = vadd.xlane.f32.xlu0 %v251
        %v743 = vpop.xlane.xlu0 %742
        %744 = vadd.xlane.f32.xlu0 %v252
        %v745 = vpop.xlane.xlu0 %744
        %v746 = vmul.f32 %v743, 0.0625
        %v747 = vmul.f32 %v745, 0.0625
        %v750 = vlaneseq
        %v751 = vshrl.u32 %v750, 7
        %v752 = vsub.s32 %v722, %v751
        %v753 = vrot.slane %v746, %v752
        %v754 = vadd.s32 %v722, 4294967288
        %v755 = vlaneseq
        %v756 = vshrl.u32 %v755, 7
        %v757 = vsub.s32 %v754, %v756
        %v758 = vrot.slane %v747, %v757
        %vm759 = vcmask 130112
        %v760 = vsel %vm759, %v758, %v753
        %777 = vset.pattern.permute.xlu0 0
        %778 = vperm.xlu0 %777, %v301
        %v779 = vpop.permute.xlu0 %778
        %780 = vset.pattern.permute.xlu0 0
        %781 = vperm.xlu0 %780, %v302
        %v782 = vpop.permute.xlu0 %781
        %783 = vset.pattern.permute.xlu0 0
        %784 = vperm.xlu0 %783, %v303
        %v785 = vpop.permute.xlu0 %784
        %786 = vset.pattern.permute.xlu0 0
        %787 = vperm.xlu0 %786, %v304
        %v788 = vpop.permute.xlu0 %787
        %789 = vset.pattern.permute.xlu0 0
        %790 = vperm.xlu0 %789, %v305
        %v791 = vpop.permute.xlu0 %790
        %792 = vset.pattern.permute.xlu0 0
        %793 = vperm.xlu0 %792, %v306
        %v794 = vpop.permute.xlu0 %793
        %795 = vset.pattern.permute.xlu0 0
        %796 = vperm.xlu0 %795, %v307
        %v797 = vpop.permute.xlu0 %796
        %798 = vset.pattern.permute.xlu0 0
        %799 = vperm.xlu0 %798, %v308
        %v800 = vpop.permute.xlu0 %799
        %801 = vset.pattern.permute.xlu0 0
        %802 = vperm.xlu0 %801, %v309
        %v803 = vpop.permute.xlu0 %802
        %804 = vset.pattern.permute.xlu0 0
        %805 = vperm.xlu0 %804, %v310
        %v806 = vpop.permute.xlu0 %805
        %807 = vset.pattern.permute.xlu0 0
        %808 = vperm.xlu0 %807, %v311
        %v809 = vpop.permute.xlu0 %808
        %810 = vset.pattern.permute.xlu0 0
        %811 = vperm.xlu0 %810, %v312
        %v812 = vpop.permute.xlu0 %811
        %813 = vset.pattern.permute.xlu0 0
        %814 = vperm.xlu0 %813, %v313
        %v815 = vpop.permute.xlu0 %814
        %816 = vset.pattern.permute.xlu0 0
        %817 = vperm.xlu0 %816, %v314
        %v818 = vpop.permute.xlu0 %817
        %819 = vset.pattern.permute.xlu0 0
        %820 = vperm.xlu0 %819, %v315
        %v821 = vpop.permute.xlu0 %820
        %822 = vset.pattern.permute.xlu0 0
        %823 = vperm.xlu0 %822, %v316
        %v824 = vpop.permute.xlu0 %823
        %v825 = vlaneseq
        %v826 = vshrl.u32 %v825, 7
        %v827 = vsub.s32 %v722, %v826
        %v828 = vrot.slane %v779, %v827
        %v829 = vlaneseq
        %v830 = vshrl.u32 %v829, 7
        %v831 = vsub.s32 %v754, %v830
        %v832 = vrot.slane %v782, %v831
        %v833 = vsel %vm759, %v832, %v828
        %v834 = vadd.s32 %v722, 4294967280
        %v835 = vlaneseq
        %v836 = vshrl.u32 %v835, 7
        %v837 = vsub.s32 %v834, %v836
        %v838 = vrot.slane %v785, %v837
        %vm839 = vcmask 195712
        %v840 = vsel %vm839, %v838, %v833
        %v841 = vadd.s32 %v722, 4294967272
        %v842 = vlaneseq
        %v843 = vshrl.u32 %v842, 7
        %v844 = vsub.s32 %v841, %v843
        %v845 = vrot.slane %v788, %v844
        %vm846 = vcmask 261312
        %v847 = vsel %vm846, %v845, %v840
        %v848 = vadd.s32 %v722, 4294967264
        %v849 = vlaneseq
        %v850 = vshrl.u32 %v849, 7
        %v851 = vsub.s32 %v848, %v850
        %v852 = vrot.slane %v791, %v851
        %vm853 = vcmask 326912
        %v854 = vsel %vm853, %v852, %v847
        %v855 = vadd.s32 %v722, 4294967256
        %v856 = vlaneseq
        %v857 = vshrl.u32 %v856, 7
        %v858 = vsub.s32 %v855, %v857
        %v859 = vrot.slane %v794, %v858
        %vm860 = vcmask 392512
        %v861 = vsel %vm860, %v859, %v854
        %v862 = vadd.s32 %v722, 4294967248
        %v863 = vlaneseq
        %v864 = vshrl.u32 %v863, 7
        %v865 = vsub.s32 %v862, %v864
        %v866 = vrot.slane %v797, %v865
        %vm867 = vcmask 458112
        %v868 = vsel %vm867, %v866, %v861
        %v869 = vadd.s32 %v722, 4294967240
        %v870 = vlaneseq
        %v871 = vshrl.u32 %v870, 7
        %v872 = vsub.s32 %v869, %v871
        %v873 = vrot.slane %v800, %v872
        %vm874 = vcmask 523712
        %v875 = vsel %vm874, %v873, %v868
        %v876 = vadd.s32 %v722, 4294967232
        %v877 = vlaneseq
        %v878 = vshrl.u32 %v877, 7
        %v879 = vsub.s32 %v876, %v878
        %v880 = vrot.slane %v803, %v879
        %vm881 = vcmask 589312
        %v882 = vsel %vm881, %v880, %v875
        %v883 = vadd.s32 %v722, 4294967224
        %v884 = vlaneseq
        %v885 = vshrl.u32 %v884, 7
        %v886 = vsub.s32 %v883, %v885
        %v887 = vrot.slane %v806, %v886
        %vm888 = vcmask 654912
        %v889 = vsel %vm888, %v887, %v882
        %v890 = vadd.s32 %v722, 4294967216
        %v891 = vlaneseq
        %v892 = vshrl.u32 %v891, 7
        %v893 = vsub.s32 %v890, %v892
        %v894 = vrot.slane %v809, %v893
        %vm895 = vcmask 720512
        %v896 = vsel %vm895, %v894, %v889
        %v897 = vadd.s32 %v722, 4294967208
        %v898 = vlaneseq
        %v899 = vshrl.u32 %v898, 7
        %v900 = vsub.s32 %v897, %v899
        %v901 = vrot.slane %v812, %v900
        %vm902 = vcmask 786112
        %v903 = vsel %vm902, %v901, %v896
        %v904 = vadd.s32 %v722, 4294967200
        %v905 = vlaneseq
        %v906 = vshrl.u32 %v905, 7
        %v907 = vsub.s32 %v904, %v906
        %v908 = vrot.slane %v815, %v907
        %vm909 = vcmask 851712
        %v910 = vsel %vm909, %v908, %v903
        %v911 = vadd.s32 %v722, 4294967192
        %v912 = vlaneseq
        %v913 = vshrl.u32 %v912, 7
        %v914 = vsub.s32 %v911, %v913
        %v915 = vrot.slane %v818, %v914
        %vm916 = vcmask 917312
        %v917 = vsel %vm916, %v915, %v910
        %v918 = vadd.s32 %v722, 4294967184
        %v919 = vlaneseq
        %v920 = vshrl.u32 %v919, 7
        %v921 = vsub.s32 %v918, %v920
        %v922 = vrot.slane %v821, %v921
        %vm923 = vcmask 982912
        %v924 = vsel %vm923, %v922, %v917
        %v925 = vadd.s32 %v722, 4294967176
        %v926 = vlaneseq
        %v927 = vshrl.u32 %v926, 7
        %v928 = vsub.s32 %v925, %v927
        %v929 = vrot.slane %v824, %v928
        %vm930 = vcmask 1048512
        %v931 = vsel %vm930, %v929, %v924
        %v933 = vsel %vm351, %v760, 0
        %v936 = vsel %vm351, %v285, 0
        %v939 = vsel %vm351, %v286, 0
        %v942 = vsel %vm351, %v287, 0
        %v945 = vsel %vm351, %v288, 0
        %v948 = vsel %vm351, %v289, 0
        %v951 = vsel %vm351, %v290, 0
        %v954 = vsel %vm351, %v291, 0
        %v957 = vsel %vm351, %v292, 0
        %v960 = vsel %vm351, %v293, 0
        %v963 = vsel %vm351, %v294, 0
        %v966 = vsel %vm351, %v295, 0
        %v969 = vsel %vm351, %v296, 0
        %v972 = vsel %vm351, %v297, 0
        %v975 = vsel %vm351, %v298, 0
        %v978 = vsel %vm351, %v299, 0
        %v981 = vsel %vm351, %v300, 0
        %983 = vmatprep.subr.mxu0 0.0
        %984 = vmatpush1.xpose.msra.mxu0 %v981
        %985 = vmatprep.subr.mxu0 0.0
        %986 = vmatpush1.xpose.msra.mxu0 %v978
        %987 = vmatprep.subr.mxu0 0.0
        %988 = vmatpush1.xpose.msra.mxu0 %v975
        %989 = vmatprep.subr.mxu0 0.0
        %990 = vmatpush1.xpose.msra.mxu0 %v972
        %991 = vmatprep.subr.mxu0 0.0
        %992 = vmatpush1.xpose.msra.mxu0 %v969
        %993 = vmatprep.subr.mxu0 0.0
        %994 = vmatpush1.xpose.msra.mxu0 %v966
        %995 = vmatprep.subr.mxu0 0.0
        %996 = vmatpush1.xpose.msra.mxu0 %v963
        %997 = vmatprep.subr.mxu0 0.0
        %998 = vmatpush1.xpose.msra.mxu0 %v960
        %999 = vmatprep.subr.mxu0 0.0
        %1000 = vmatpush1.xpose.msra.mxu0 %v957
        %1001 = vmatprep.subr.mxu0 0.0
        %1002 = vmatpush1.xpose.msra.mxu0 %v954
        %1003 = vmatprep.subr.mxu0 0.0
        %1004 = vmatpush1.xpose.msra.mxu0 %v951
        %1005 = vmatprep.subr.mxu0 0.0
        %1006 = vmatpush1.xpose.msra.mxu0 %v948
        %1007 = vmatprep.subr.mxu0 0.0
        %1008 = vmatpush1.xpose.msra.mxu0 %v945
        %1009 = vmatprep.subr.mxu0 0.0
        %1010 = vmatpush1.xpose.msra.mxu0 %v942
        %1011 = vmatprep.subr.mxu0 0.0
        %1012 = vmatpush1.xpose.msra.mxu0 %v939
        %1013 = vmatprep.subr.mxu0 0.0
        %1014 = vmatpush1.xpose.msra.mxu0 %v936
        %1015 = vmatprep.subr.mxu0 0.0
        %1016 = vmatpush2.xpose.msra.mxu0 0.0
        %1017 = vmatprep.subr.mxu0 0.0
        %1018 = vmatpush2.xpose.msra.mxu0 0.0
        %1019 = vmatprep.subr.mxu0 0.0
        %1020 = vmatpush2.xpose.msra.mxu0 0.0
        %1021 = vmatprep.subr.mxu0 0.0
        %1022 = vmatpush2.xpose.msra.mxu0 0.0
        %1023 = vmatprep.subr.mxu0 0.0
        %1024 = vmatpush2.xpose.msra.mxu0 0.0
        %1025 = vmatprep.subr.mxu0 0.0
        %1026 = vmatpush2.xpose.msra.mxu0 0.0
        %1027 = vmatprep.subr.mxu0 0.0
        %1028 = vmatpush2.xpose.msra.mxu0 0.0
        %1029 = vmatprep.subr.mxu0 0.0
        %1030 = vmatpush2.xpose.msra.mxu0 0.0
        %1031 = vmatprep.subr.mxu0 0.0
        %1032 = vmatpush2.xpose.msra.mxu0 0.0
        %1033 = vmatprep.subr.mxu0 0.0
        %1034 = vmatpush2.xpose.msra.mxu0 0.0
        %1035 = vmatprep.subr.mxu0 0.0
        %1036 = vmatpush2.xpose.msra.mxu0 0.0
        %1037 = vmatprep.subr.mxu0 0.0
        %1038 = vmatpush2.xpose.msra.mxu0 0.0
        %1039 = vmatprep.subr.mxu0 0.0
        %1040 = vmatpush2.xpose.msra.mxu0 0.0
        %1041 = vmatprep.subr.mxu0 0.0
        %1042 = vmatpush2.xpose.msra.mxu0 0.0
        %1043 = vmatprep.subr.mxu0 0.0
        %1044 = vmatpush2.xpose.msra.mxu0 0.0
        %1045 = vmatprep.subr.mxu0 0.0
        %1046 = vmatpush2.xpose.msra.mxu0 0.0
        %1047 = vmatprep.mubr.f32.mxu0 0.0
        %1048 = vmatmul.mubr.f32.gmra.mxu0 %v933
        %v1049 = vpop.f32.mrf.mxu0
        %v1050 = vadd.f32 %v931, %v1049
        %v1051 = vpop.f32.mrf.mxu0
        %1052 = vdwg.mxu0
        %v1053 = vxor.u32 %v1050, 2147483648
        %v1054 = vmul.f32 %v1053, 1.442695
        %v1055 = vpow.pop %v1054
        %v1056 = vadd.f32 %v1055, 1.0
        %v1057 = vrcp.pop %v1056
        %v1058 = vmul.f32 1.0, %v1057
        %v1059 = vsub.f32 %v1058, 0.5
        %v1060 = vadd.f32 %v726, %v727
        %v1061 = vadd.f32 %v1060, %v728
        %v1062 = vadd.f32 %v1061, %v729
        %v1063 = vadd.f32 %v1062, %v730
        %v1064 = vadd.f32 %v1063, %v731
        %v1065 = vadd.f32 %v1064, %v732
        %v1066 = vadd.f32 %v1065, %v733
        %v1067 = vadd.f32 %v1066, %v734
        %v1068 = vadd.f32 %v1067, %v735
        %v1069 = vadd.f32 %v1068, %v736
        %v1070 = vadd.f32 %v1069, %v737
        %v1071 = vadd.f32 %v1070, %v738
        %v1072 = vadd.f32 %v1071, %v739
        %v1073 = vadd.f32 %v1072, %v740
        %v1074 = vadd.f32 %v1073, %v741
        %v1075 = vrot.slane %v1074, 4
        %v1076 = vadd.f32 %v1074, %v1075
        %v1077 = vrot.slane %v1076, 2
        %v1078 = vadd.f32 %v1076, %v1077
        %v1079 = vrot.slane %v1078, 1
        %v1080 = vadd.f32 %v1078, %v1079
        %v1081 = vlaneseq
        %v1082 = vshrl.u32 %v1081, 7
        %v1083 = vsub.s32 0, %v1082
        %v1084 = vrot.slane %v1059, %v1083
        %1086 = vbcast.lane.b32.xlu0 %v1084, 256
        %v1087 = vpop.permute.xlu0 %1086
        %s1089 = sor.u32 256, 8
        %1090 = vbcast.lane.b32.xlu0 %v1084, %s1089
        %v1091 = vpop.permute.xlu0 %1090
        %s1093 = sor.u32 256, 16
        %1094 = vbcast.lane.b32.xlu0 %v1084, %s1093
        %v1095 = vpop.permute.xlu0 %1094
        %s1097 = sor.u32 256, 24
        %1098 = vbcast.lane.b32.xlu0 %v1084, %s1097
        %v1099 = vpop.permute.xlu0 %1098
        %s1101 = sor.u32 256, 32
        %1102 = vbcast.lane.b32.xlu0 %v1084, %s1101
        %v1103 = vpop.permute.xlu0 %1102
        %s1105 = sor.u32 256, 40
        %1106 = vbcast.lane.b32.xlu0 %v1084, %s1105
        %v1107 = vpop.permute.xlu0 %1106
        %s1109 = sor.u32 256, 48
        %1110 = vbcast.lane.b32.xlu0 %v1084, %s1109
        %v1111 = vpop.permute.xlu0 %1110
        %s1113 = sor.u32 256, 56
        %1114 = vbcast.lane.b32.xlu0 %v1084, %s1113
        %v1115 = vpop.permute.xlu0 %1114
        %s1117 = sor.u32 256, 64
        %1118 = vbcast.lane.b32.xlu0 %v1084, %s1117
        %v1119 = vpop.permute.xlu0 %1118
        %s1121 = sor.u32 256, 72
        %1122 = vbcast.lane.b32.xlu0 %v1084, %s1121
        %v1123 = vpop.permute.xlu0 %1122
        %s1125 = sor.u32 256, 80
        %1126 = vbcast.lane.b32.xlu0 %v1084, %s1125
        %v1127 = vpop.permute.xlu0 %1126
        %s1129 = sor.u32 256, 88
        %1130 = vbcast.lane.b32.xlu0 %v1084, %s1129
        %v1131 = vpop.permute.xlu0 %1130
        %s1133 = sor.u32 256, 96
        %1134 = vbcast.lane.b32.xlu0 %v1084, %s1133
        %v1135 = vpop.permute.xlu0 %1134
        %s1137 = sor.u32 256, 104
        %1138 = vbcast.lane.b32.xlu0 %v1084, %s1137
        %v1139 = vpop.permute.xlu0 %1138
        %s1141 = sor.u32 256, 112
        %1142 = vbcast.lane.b32.xlu0 %v1084, %s1141
        %v1143 = vpop.permute.xlu0 %1142
        %s1145 = sor.u32 256, 120
        %1146 = vbcast.lane.b32.xlu0 %v1084, %s1145
        %v1147 = vpop.permute.xlu0 %1146
        %v1148 = vmul.f32 %v726, %v1087
        %v1149 = vmul.f32 %v727, %v1091
        %v1150 = vmul.f32 %v728, %v1095
        %v1151 = vmul.f32 %v729, %v1099
        %v1152 = vmul.f32 %v730, %v1103
        %v1153 = vmul.f32 %v731, %v1107
        %v1154 = vmul.f32 %v732, %v1111
        %v1155 = vmul.f32 %v733, %v1115
        %v1156 = vmul.f32 %v734, %v1119
        %v1157 = vmul.f32 %v735, %v1123
        %v1158 = vmul.f32 %v736, %v1127
        %v1159 = vmul.f32 %v737, %v1131
        %v1160 = vmul.f32 %v738, %v1135
        %v1161 = vmul.f32 %v739, %v1139
        %v1162 = vmul.f32 %v740, %v1143
        %v1163 = vmul.f32 %v741, %v1147
        %v1164 = vpack.c.bf16 %v1149, %v1148
        %v1165 = vpack.c.bf16 %v1151, %v1150
        %v1166 = vpack.c.bf16 %v1153, %v1152
        %v1167 = vpack.c.bf16 %v1155, %v1154
        %v1168 = vpack.c.bf16 %v1157, %v1156
        %v1169 = vpack.c.bf16 %v1159, %v1158
        %v1170 = vpack.c.bf16 %v1161, %v1160
        %v1171 = vpack.c.bf16 %v1163, %v1162
        %v1172 = vpack.c.bf16 %v727, %v726
        %v1173 = vpack.c.bf16 %v729, %v728
        %v1174 = vpack.c.bf16 %v731, %v730
        %v1175 = vpack.c.bf16 %v733, %v732
        %v1176 = vpack.c.bf16 %v735, %v734
        %v1177 = vpack.c.bf16 %v737, %v736
        %v1178 = vpack.c.bf16 %v739, %v738
        %v1179 = vpack.c.bf16 %v741, %v740
        %1181 = vbcast.lane.b32.xlu0 %v1080, 256
        %v1182 = vpop.permute.xlu0 %1181
        %s1184 = sor.u32 256, 8
        %1185 = vbcast.lane.b32.xlu0 %v1080, %s1184
        %v1186 = vpop.permute.xlu0 %1185
        %s1188 = sor.u32 256, 16
        %1189 = vbcast.lane.b32.xlu0 %v1080, %s1188
        %v1190 = vpop.permute.xlu0 %1189
        %s1192 = sor.u32 256, 24
        %1193 = vbcast.lane.b32.xlu0 %v1080, %s1192
        %v1194 = vpop.permute.xlu0 %1193
        %s1196 = sor.u32 256, 32
        %1197 = vbcast.lane.b32.xlu0 %v1080, %s1196
        %v1198 = vpop.permute.xlu0 %1197
        %s1200 = sor.u32 256, 40
        %1201 = vbcast.lane.b32.xlu0 %v1080, %s1200
        %v1202 = vpop.permute.xlu0 %1201
        %s1204 = sor.u32 256, 48
        %1205 = vbcast.lane.b32.xlu0 %v1080, %s1204
        %v1206 = vpop.permute.xlu0 %1205
        %s1208 = sor.u32 256, 56
        %1209 = vbcast.lane.b32.xlu0 %v1080, %s1208
        %v1210 = vpop.permute.xlu0 %1209
        %s1212 = sor.u32 256, 64
        %1213 = vbcast.lane.b32.xlu0 %v1080, %s1212
        %v1214 = vpop.permute.xlu0 %1213
        %s1216 = sor.u32 256, 72
        %1217 = vbcast.lane.b32.xlu0 %v1080, %s1216
        %v1218 = vpop.permute.xlu0 %1217
        %s1220 = sor.u32 256, 80
        %1221 = vbcast.lane.b32.xlu0 %v1080, %s1220
        %v1222 = vpop.permute.xlu0 %1221
        %s1224 = sor.u32 256, 88
        %1225 = vbcast.lane.b32.xlu0 %v1080, %s1224
        %v1226 = vpop.permute.xlu0 %1225
        %s1228 = sor.u32 256, 96
        %1229 = vbcast.lane.b32.xlu0 %v1080, %s1228
        %v1230 = vpop.permute.xlu0 %1229
        %s1232 = sor.u32 256, 104
        %1233 = vbcast.lane.b32.xlu0 %v1080, %s1232
        %v1234 = vpop.permute.xlu0 %1233
        %s1236 = sor.u32 256, 112
        %1237 = vbcast.lane.b32.xlu0 %v1080, %s1236
        %v1238 = vpop.permute.xlu0 %1237
        %s1240 = sor.u32 256, 120
        %1241 = vbcast.lane.b32.xlu0 %v1080, %s1240
        %v1242 = vpop.permute.xlu0 %1241
        %v1243 = vmul.f32 %v1182, %v1080
        %v1244 = vmul.f32 %v1186, %v1080
        %v1245 = vmul.f32 %v1190, %v1080
        %v1246 = vmul.f32 %v1194, %v1080
        %v1247 = vmul.f32 %v1198, %v1080
        %v1248 = vmul.f32 %v1202, %v1080
        %v1249 = vmul.f32 %v1206, %v1080
        %v1250 = vmul.f32 %v1210, %v1080
        %v1251 = vmul.f32 %v1214, %v1080
        %v1252 = vmul.f32 %v1218, %v1080
        %v1253 = vmul.f32 %v1222, %v1080
        %v1254 = vmul.f32 %v1226, %v1080
        %v1255 = vmul.f32 %v1230, %v1080
        %v1256 = vmul.f32 %v1234, %v1080
        %v1257 = vmul.f32 %v1238, %v1080
        %v1258 = vmul.f32 %v1242, %v1080
        %v1259 = vmul.f32 %v1243, 0.5
        %v1260 = vmul.f32 %v1244, 0.5
        %v1261 = vmul.f32 %v1245, 0.5
        %v1262 = vmul.f32 %v1246, 0.5
        %v1263 = vmul.f32 %v1247, 0.5
        %v1264 = vmul.f32 %v1248, 0.5
        %v1265 = vmul.f32 %v1249, 0.5
        %v1266 = vmul.f32 %v1250, 0.5
        %v1267 = vmul.f32 %v1251, 0.5
        %v1268 = vmul.f32 %v1252, 0.5
        %v1269 = vmul.f32 %v1253, 0.5
        %v1270 = vmul.f32 %v1254, 0.5
        %v1271 = vmul.f32 %v1255, 0.5
        %v1272 = vmul.f32 %v1256, 0.5
        %v1273 = vmul.f32 %v1257, 0.5
        %v1274 = vmul.f32 %v1258, 0.5
        %1275 = vxpose.xlu0.c.b16.start [1/8] %v1164, 128
        %1276 = vxpose.xlu0.c.b16.cont [2/8] %v1165, 128
        %1277 = vxpose.xlu0.c.b16.cont [3/8] %v1166, 128
        %1278 = vxpose.xlu0.c.b16.cont [4/8] %v1167, 128
        %1279 = vxpose.xlu0.c.b16.cont [5/8] %v1168, 128
        %1280 = vxpose.xlu0.c.b16.cont [6/8] %v1169, 128
        %1281 = vxpose.xlu0.c.b16.cont [7/8] %v1170, 128
        %1282 = vxpose.xlu0.c.b16.end [8/8] %v1171, 128
        %v1283 = vpop.trf.xlu0
        %v1284 = vpop.trf.xlu0
        %v1285 = vpop.trf.xlu0
        %v1286 = vpop.trf.xlu0
        %v1287 = vpop.trf.xlu0
        %v1288 = vpop.trf.xlu0
        %v1289 = vpop.trf.xlu0
        %v1290 = vpop.trf.xlu0
        %1291 = vmatprep.subr.bf16.mxu0 0
        %1292 = vmatpush1.bf16.msra.mxu0 %v1179
        %1293 = vmatprep.subr.bf16.mxu0 0
        %1294 = vmatpush1.bf16.msra.mxu0 %v1178
        %1295 = vmatprep.subr.bf16.mxu0 0
        %1296 = vmatpush1.bf16.msra.mxu0 %v1177
        %1297 = vmatprep.subr.bf16.mxu0 0
        %1298 = vmatpush1.bf16.msra.mxu0 %v1176
        %1299 = vmatprep.subr.bf16.mxu0 0
        %1300 = vmatpush1.bf16.msra.mxu0 %v1175
        %1301 = vmatprep.subr.bf16.mxu0 0
        %1302 = vmatpush1.bf16.msra.mxu0 %v1174
        %1303 = vmatprep.subr.bf16.mxu0 0
        %1304 = vmatpush1.bf16.msra.mxu0 %v1173
        %1305 = vmatprep.subr.bf16.mxu0 0
        %1306 = vmatpush1.bf16.msra.mxu0 %v1172
        %1307 = vmatprep.subr.bf16.mxu0 0
        %1308 = vmatpush2.bf16.msra.mxu0 0
        %1309 = vmatprep.subr.bf16.mxu0 0
        %1310 = vmatpush2.bf16.msra.mxu0 0
        %1311 = vmatprep.subr.bf16.mxu0 0
        %1312 = vmatpush2.bf16.msra.mxu0 0
        %1313 = vmatprep.subr.bf16.mxu0 0
        %1314 = vmatpush2.bf16.msra.mxu0 0
        %1315 = vmatprep.subr.bf16.mxu0 0
        %1316 = vmatpush2.bf16.msra.mxu0 0
        %1317 = vmatprep.subr.bf16.mxu0 0
        %1318 = vmatpush2.bf16.msra.mxu0 0
        %1319 = vmatprep.subr.bf16.mxu0 0
        %1320 = vmatpush2.bf16.msra.mxu0 0
        %1321 = vmatprep.subr.bf16.mxu0 0
        %1322 = vmatpush2.bf16.msra.mxu0 0
        %1323 = vmatprep.mubr.bf16.mxu0 0
        %1324 = vmatmul.mubr.bf16.gmra.mxu0 %v1283
        %v1325 = vpop.f32.mrf.mxu0
        %v1326 = vadd.f32 %v1259, %v1325
        %v1327 = vpop.f32.mrf.mxu0
        %v1328 = vpop.f32.mrf.mxu0
        %v1329 = vadd.f32 %v1260, %v1328
        %v1330 = vpop.f32.mrf.mxu0
        %1331 = vmatprep.mubr.bf16.mxu0 0
        %1332 = vmatmul.mubr.bf16.gmra.mxu0 %v1284
        %v1333 = vpop.f32.mrf.mxu0
        %v1334 = vadd.f32 %v1261, %v1333
        %v1335 = vpop.f32.mrf.mxu0
        %v1336 = vpop.f32.mrf.mxu0
        %v1337 = vadd.f32 %v1262, %v1336
        %v1338 = vpop.f32.mrf.mxu0
        %1339 = vmatprep.mubr.bf16.mxu0 0
        %1340 = vmatmul.mubr.bf16.gmra.mxu0 %v1285
        %v1341 = vpop.f32.mrf.mxu0
        %v1342 = vadd.f32 %v1263, %v1341
        %v1343 = vpop.f32.mrf.mxu0
        %v1344 = vpop.f32.mrf.mxu0
        %v1345 = vadd.f32 %v1264, %v1344
        %v1346 = vpop.f32.mrf.mxu0
        %1347 = vmatprep.mubr.bf16.mxu0 0
        %1348 = vmatmul.mubr.bf16.gmra.mxu0 %v1286
        %v1349 = vpop.f32.mrf.mxu0
        %v1350 = vadd.f32 %v1265, %v1349
        %v1351 = vpop.f32.mrf.mxu0
        %v1352 = vpop.f32.mrf.mxu0
        %v1353 = vadd.f32 %v1266, %v1352
        %v1354 = vpop.f32.mrf.mxu0
        %1355 = vmatprep.mubr.bf16.mxu0 0
        %1356 = vmatmul.mubr.bf16.gmra.mxu0 %v1287
        %v1357 = vpop.f32.mrf.mxu0
        %v1358 = vadd.f32 %v1267, %v1357
        %v1359 = vpop.f32.mrf.mxu0
        %v1360 = vpop.f32.mrf.mxu0
        %v1361 = vadd.f32 %v1268, %v1360
        %v1362 = vpop.f32.mrf.mxu0
        %1363 = vmatprep.mubr.bf16.mxu0 0
        %1364 = vmatmul.mubr.bf16.gmra.mxu0 %v1288
        %v1365 = vpop.f32.mrf.mxu0
        %v1366 = vadd.f32 %v1269, %v1365
        %v1367 = vpop.f32.mrf.mxu0
        %v1368 = vpop.f32.mrf.mxu0
        %v1369 = vadd.f32 %v1270, %v1368
        %v1370 = vpop.f32.mrf.mxu0
        %1371 = vmatprep.mubr.bf16.mxu0 0
        %1372 = vmatmul.mubr.bf16.gmra.mxu0 %v1289
        %v1373 = vpop.f32.mrf.mxu0
        %v1374 = vadd.f32 %v1271, %v1373
        %v1375 = vpop.f32.mrf.mxu0
        %v1376 = vpop.f32.mrf.mxu0
        %v1377 = vadd.f32 %v1272, %v1376
        %v1378 = vpop.f32.mrf.mxu0
        %1379 = vmatprep.mubr.bf16.mxu0 0
        %1380 = vmatmul.mubr.bf16.gmra.mxu0 %v1290
        %v1381 = vpop.f32.mrf.mxu0
        %v1382 = vadd.f32 %v1273, %v1381
        %v1383 = vpop.f32.mrf.mxu0
        %v1384 = vpop.f32.mrf.mxu0
        %v1385 = vadd.f32 %v1274, %v1384
        %v1386 = vpop.f32.mrf.mxu0
        %1387 = vdwg.mxu0
        %v1388 = vlaneseq
        %v1389 = vshrl.u32 %v1388, 7
        %v1390 = vadd.s32 %v1389, 8
        %v1391 = vadd.s32 %v1389, 16
        %v1392 = vadd.s32 %v1389, 24
        %v1393 = vadd.s32 %v1389, 32
        %v1394 = vadd.s32 %v1389, 40
        %v1395 = vadd.s32 %v1389, 48
        %v1396 = vadd.s32 %v1389, 56
        %v1397 = vadd.s32 %v1389, 64
        %v1398 = vadd.s32 %v1389, 72
        %v1399 = vadd.s32 %v1389, 80
        %v1400 = vadd.s32 %v1389, 88
        %v1401 = vadd.s32 %v1389, 96
        %v1402 = vadd.s32 %v1389, 104
        %v1403 = vadd.s32 %v1389, 112
        %v1404 = vadd.s32 %v1389, 120
        %vm1405 = vcmp.eq.s32.totalorder %v1389, %v722
        %vm1406 = vcmp.eq.s32.totalorder %v1390, %v722
        %vm1407 = vcmp.eq.s32.totalorder %v1391, %v722
        %vm1408 = vcmp.eq.s32.totalorder %v1392, %v722
        %vm1409 = vcmp.eq.s32.totalorder %v1393, %v722
        %vm1410 = vcmp.eq.s32.totalorder %v1394, %v722
        %vm1411 = vcmp.eq.s32.totalorder %v1395, %v722
        %vm1412 = vcmp.eq.s32.totalorder %v1396, %v722
        %vm1413 = vcmp.eq.s32.totalorder %v1397, %v722
        %vm1414 = vcmp.eq.s32.totalorder %v1398, %v722
        %vm1415 = vcmp.eq.s32.totalorder %v1399, %v722
        %vm1416 = vcmp.eq.s32.totalorder %v1400, %v722
        %vm1417 = vcmp.eq.s32.totalorder %v1401, %v722
        %vm1418 = vcmp.eq.s32.totalorder %v1402, %v722
        %vm1419 = vcmp.eq.s32.totalorder %v1403, %v722
        %vm1420 = vcmp.eq.s32.totalorder %v1404, %v722
        %v1421 = vsel %vm1405, 1, 0
        %v1422 = vsel %vm1406, 1, 0
        %v1423 = vsel %vm1407, 1, 0
        %v1424 = vsel %vm1408, 1, 0
        %v1425 = vsel %vm1409, 1, 0
        %v1426 = vsel %vm1410, 1, 0
        %v1427 = vsel %vm1411, 1, 0
        %v1428 = vsel %vm1412, 1, 0
        %v1429 = vsel %vm1413, 1, 0
        %v1430 = vsel %vm1414, 1, 0
        %v1431 = vsel %vm1415, 1, 0
        %v1432 = vsel %vm1416, 1, 0
        %v1433 = vsel %vm1417, 1, 0
        %v1434 = vsel %vm1418, 1, 0
        %v1435 = vsel %vm1419, 1, 0
        %v1436 = vsel %vm1420, 1, 0
        %v1437 = vcvt.s32.f32 %v1421
        %v1438 = vcvt.s32.f32 %v1422
        %v1439 = vcvt.s32.f32 %v1423
        %v1440 = vcvt.s32.f32 %v1424
        %v1441 = vcvt.s32.f32 %v1425
        %v1442 = vcvt.s32.f32 %v1426
        %v1443 = vcvt.s32.f32 %v1427
        %v1444 = vcvt.s32.f32 %v1428
        %v1445 = vcvt.s32.f32 %v1429
        %v1446 = vcvt.s32.f32 %v1430
        %v1447 = vcvt.s32.f32 %v1431
        %v1448 = vcvt.s32.f32 %v1432
        %v1449 = vcvt.s32.f32 %v1433
        %v1450 = vcvt.s32.f32 %v1434
        %v1451 = vcvt.s32.f32 %v1435
        %v1452 = vcvt.s32.f32 %v1436
        %v1453 = vmax.f32 %v1326, 0.0
        %v1454 = vmax.f32 %v1329, 0.0
        %v1455 = vmax.f32 %v1334, 0.0
        %v1456 = vmax.f32 %v1337, 0.0
        %v1457 = vmax.f32 %v1342, 0.0
        %v1458 = vmax.f32 %v1345, 0.0
        %v1459 = vmax.f32 %v1350, 0.0
        %v1460 = vmax.f32 %v1353, 0.0
        %v1461 = vmax.f32 %v1358, 0.0
        %v1462 = vmax.f32 %v1361, 0.0
        %v1463 = vmax.f32 %v1366, 0.0
        %v1464 = vmax.f32 %v1369, 0.0
        %v1465 = vmax.f32 %v1374, 0.0
        %v1466 = vmax.f32 %v1377, 0.0
        %v1467 = vmax.f32 %v1382, 0.0
        %v1468 = vmax.f32 %v1385, 0.0
        %v1469 = vadd.f32 %v1453, %v1437
        %v1470 = vadd.f32 %v1454, %v1438
        %v1471 = vadd.f32 %v1455, %v1439
        %v1472 = vadd.f32 %v1456, %v1440
        %v1473 = vadd.f32 %v1457, %v1441
        %v1474 = vadd.f32 %v1458, %v1442
        %v1475 = vadd.f32 %v1459, %v1443
        %v1476 = vadd.f32 %v1460, %v1444
        %v1477 = vadd.f32 %v1461, %v1445
        %v1478 = vadd.f32 %v1462, %v1446
        %v1479 = vadd.f32 %v1463, %v1447
        %v1480 = vadd.f32 %v1464, %v1448
        %v1481 = vadd.f32 %v1465, %v1449
        %v1482 = vadd.f32 %v1466, %v1450
        %v1483 = vadd.f32 %v1467, %v1451
        %v1484 = vadd.f32 %v1468, %v1452
        %v1485 = vadd.f32 %v1469, %v1470
        %v1486 = vadd.f32 %v1485, %v1471
        %v1487 = vadd.f32 %v1486, %v1472
        %v1488 = vadd.f32 %v1487, %v1473
        %v1489 = vadd.f32 %v1488, %v1474
        %v1490 = vadd.f32 %v1489, %v1475
        %v1491 = vadd.f32 %v1490, %v1476
        %v1492 = vadd.f32 %v1491, %v1477
        %v1493 = vadd.f32 %v1492, %v1478
        %v1494 = vadd.f32 %v1493, %v1479
        %v1495 = vadd.f32 %v1494, %v1480
        %v1496 = vadd.f32 %v1495, %v1481
        %v1497 = vadd.f32 %v1496, %v1482
        %v1498 = vadd.f32 %v1497, %v1483
        %v1499 = vadd.f32 %v1498, %v1484
        %v1500 = vrot.slane %v1499, 4
        %v1501 = vadd.f32 %v1499, %v1500
        %v1502 = vrot.slane %v1501, 2
        %v1503 = vadd.f32 %v1501, %v1502
        %v1504 = vrot.slane %v1503, 1
        %v1505 = vadd.f32 %v1503, %v1504
        %v1506 = vrsqrt.pop %v1505
        %v1507 = vpack.c.bf16 %v1470, %v1469
        %v1508 = vpack.c.bf16 %v1472, %v1471
        %v1509 = vpack.c.bf16 %v1474, %v1473
        %v1510 = vpack.c.bf16 %v1476, %v1475
        %v1511 = vpack.c.bf16 %v1478, %v1477
        %v1512 = vpack.c.bf16 %v1480, %v1479
        %v1513 = vpack.c.bf16 %v1482, %v1481
        %v1514 = vpack.c.bf16 %v1484, %v1483
        %v1515 = vmul.f32 %v251, %v1506
        %v1516 = vmul.f32 %v252, %v1506
        %v1517 = vpack.c.bf16 %v1516, %v1515
        %v1518 = vpack.c.bf16 %v318, %v317
        %1519 = vmatprep.subr.bf16.mxu0 0
        %1520 = vmatpush1.bf16.msra.mxu0 %v1514
        %1521 = vmatprep.subr.bf16.mxu0 0
        %1522 = vmatpush1.bf16.msra.mxu0 %v1513
        %1523 = vmatprep.subr.bf16.mxu0 0
        %1524 = vmatpush1.bf16.msra.mxu0 %v1512
        %1525 = vmatprep.subr.bf16.mxu0 0
        %1526 = vmatpush1.bf16.msra.mxu0 %v1511
        %1527 = vmatprep.subr.bf16.mxu0 0
        %1528 = vmatpush1.bf16.msra.mxu0 %v1510
        %1529 = vmatprep.subr.bf16.mxu0 0
        %1530 = vmatpush1.bf16.msra.mxu0 %v1509
        %1531 = vmatprep.subr.bf16.mxu0 0
        %1532 = vmatpush1.bf16.msra.mxu0 %v1508
        %1533 = vmatprep.subr.bf16.mxu0 0
        %1534 = vmatpush1.bf16.msra.mxu0 %v1507
        %1535 = vmatprep.subr.bf16.mxu0 0
        %1536 = vmatpush2.bf16.msra.mxu0 0
        %1537 = vmatprep.subr.bf16.mxu0 0
        %1538 = vmatpush2.bf16.msra.mxu0 0
        %1539 = vmatprep.subr.bf16.mxu0 0
        %1540 = vmatpush2.bf16.msra.mxu0 0
        %1541 = vmatprep.subr.bf16.mxu0 0
        %1542 = vmatpush2.bf16.msra.mxu0 0
        %1543 = vmatprep.subr.bf16.mxu0 0
        %1544 = vmatpush2.bf16.msra.mxu0 0
        %1545 = vmatprep.subr.bf16.mxu0 0
        %1546 = vmatpush2.bf16.msra.mxu0 0
        %1547 = vmatprep.subr.bf16.mxu0 0
        %1548 = vmatpush2.bf16.msra.mxu0 0
        %1549 = vmatprep.subr.bf16.mxu0 0
        %1550 = vmatpush2.bf16.msra.mxu0 0
        %1551 = vmatprep.mubr.bf16.mxu0 0
        %1552 = vmatmul.mubr.bf16.gmra.mxu0 %v1517
        %v1553 = vpop.f32.mrf.mxu0
        %v1554 = vadd.f32 0.0, %v1553
        %v1555 = vpop.f32.mrf.mxu0
        %v1556 = vpop.f32.mrf.mxu0
        %v1557 = vadd.f32 0.0, %v1556
        %v1558 = vpop.f32.mrf.mxu0
        %1559 = vdwg.mxu0
        %v1560 = vmul.f32 %v1554, %v1506
        %v1561 = vmul.f32 %v1557, %v1506
        %v1562 = vpack.c.bf16 %v1561, %v1560
        %1563 = vxpose.xlu0.c.b16.start [1/8] %v1562, 128
        %1564 = vxpose.xlu0.c.b16.cont [2/8] 0, 128
        %1565 = vxpose.xlu0.c.b16.cont [3/8] 0, 128
        %1566 = vxpose.xlu0.c.b16.cont [4/8] 0, 128
        %1567 = vxpose.xlu0.c.b16.cont [5/8] 0, 128
        %1568 = vxpose.xlu0.c.b16.cont [6/8] 0, 128
        %1569 = vxpose.xlu0.c.b16.cont [7/8] 0, 128
        %1570 = vxpose.xlu0.c.b16.end [8/8] 0, 128
        %v1571 = vpop.trf.xlu0
        %v1572 = vpop.trf.xlu0
        %v1573 = vpop.trf.xlu0
        %v1574 = vpop.trf.xlu0
        %v1575 = vpop.trf.xlu0
        %v1576 = vpop.trf.xlu0
        %v1577 = vpop.trf.xlu0
        %v1578 = vpop.trf.xlu0
        %v1580 = vsel %vm351, %v1571, 0
        %v1583 = vsel %vm351, %v1572, 0
        %v1586 = vsel %vm351, %v1573, 0
        %v1589 = vsel %vm351, %v1574, 0
        %v1592 = vsel %vm351, %v1575, 0
        %v1595 = vsel %vm351, %v1576, 0
        %v1598 = vsel %vm351, %v1577, 0
        %v1601 = vsel %vm351, %v1578, 0
        %v1604 = vsel %vm351, %v1518, 0
        %1606 = vmatprep.subr.bf16.mxu0 0
        %1607 = vmatpush1.bf16.xpose.msra.mxu0 0
        %1608 = vmatprep.subr.bf16.mxu0 0
        %1609 = vmatpush1.bf16.xpose.msra.mxu0 0
        %1610 = vmatprep.subr.bf16.mxu0 0
        %1611 = vmatpush1.bf16.xpose.msra.mxu0 0
        %1612 = vmatprep.subr.bf16.mxu0 0
        %1613 = vmatpush1.bf16.xpose.msra.mxu0 0
        %1614 = vmatprep.subr.bf16.mxu0 0
        %1615 = vmatpush1.bf16.xpose.msra.mxu0 0
        %1616 = vmatprep.subr.bf16.mxu0 0
        %1617 = vmatpush1.bf16.xpose.msra.mxu0 0
        %1618 = vmatprep.subr.bf16.mxu0 0
        %1619 = vmatpush1.bf16.xpose.msra.mxu0 0
        %1620 = vmatprep.subr.bf16.mxu0 0
        %1621 = vmatpush1.bf16.xpose.msra.mxu0 %v1604
        %1622 = vmatprep.subr.bf16.mxu0 0
        %1623 = vmatpush2.bf16.xpose.msra.mxu0 0
        %1624 = vmatprep.subr.bf16.mxu0 0
        %1625 = vmatpush2.bf16.xpose.msra.mxu0 0
        %1626 = vmatprep.subr.bf16.mxu0 0
        %1627 = vmatpush2.bf16.xpose.msra.mxu0 0
        %1628 = vmatprep.subr.bf16.mxu0 0
        %1629 = vmatpush2.bf16.xpose.msra.mxu0 0
        %1630 = vmatprep.subr.bf16.mxu0 0
        %1631 = vmatpush2.bf16.xpose.msra.mxu0 0
        %1632 = vmatprep.subr.bf16.mxu0 0
        %1633 = vmatpush2.bf16.xpose.msra.mxu0 0
        %1634 = vmatprep.subr.bf16.mxu0 0
        %1635 = vmatpush2.bf16.xpose.msra.mxu0 0
        %1636 = vmatprep.subr.bf16.mxu0 0
        %1637 = vmatpush2.bf16.xpose.msra.mxu0 0
        %1638 = vmatprep.mubr.bf16.mxu0 0
        %1639 = vmatmul.mubr.bf16.gmra.mxu0 %v1580
        %v1640 = vpop.f32.mrf.mxu0
        %v1641 = vadd.f32 0.0, %v1640
        %v1642 = vpop.f32.mrf.mxu0
        %v1643 = vpop.f32.mrf.mxu0
        %v1644 = vadd.f32 0.0, %v1643
        %v1645 = vpop.f32.mrf.mxu0
        %1646 = vmatprep.mubr.bf16.mxu0 0
        %1647 = vmatmul.mubr.bf16.gmra.mxu0 %v1583
        %v1648 = vpop.f32.mrf.mxu0
        %v1649 = vadd.f32 0.0, %v1648
        %v1650 = vpop.f32.mrf.mxu0
        %v1651 = vpop.f32.mrf.mxu0
        %v1652 = vadd.f32 0.0, %v1651
        %v1653 = vpop.f32.mrf.mxu0
        %1654 = vmatprep.mubr.bf16.mxu0 0
        %1655 = vmatmul.mubr.bf16.gmra.mxu0 %v1586
        %v1656 = vpop.f32.mrf.mxu0
        %v1657 = vadd.f32 0.0, %v1656
        %v1658 = vpop.f32.mrf.mxu0
        %v1659 = vpop.f32.mrf.mxu0
        %v1660 = vadd.f32 0.0, %v1659
        %v1661 = vpop.f32.mrf.mxu0
        %1662 = vmatprep.mubr.bf16.mxu0 0
        %1663 = vmatmul.mubr.bf16.gmra.mxu0 %v1589
        %v1664 = vpop.f32.mrf.mxu0
        %v1665 = vadd.f32 0.0, %v1664
        %v1666 = vpop.f32.mrf.mxu0
        %v1667 = vpop.f32.mrf.mxu0
        %v1668 = vadd.f32 0.0, %v1667
        %v1669 = vpop.f32.mrf.mxu0
        %1670 = vmatprep.mubr.bf16.mxu0 0
        %1671 = vmatmul.mubr.bf16.gmra.mxu0 %v1592
        %v1672 = vpop.f32.mrf.mxu0
        %v1673 = vadd.f32 0.0, %v1672
        %v1674 = vpop.f32.mrf.mxu0
        %v1675 = vpop.f32.mrf.mxu0
        %v1676 = vadd.f32 0.0, %v1675
        %v1677 = vpop.f32.mrf.mxu0
        %1678 = vmatprep.mubr.bf16.mxu0 0
        %1679 = vmatmul.mubr.bf16.gmra.mxu0 %v1595
        %v1680 = vpop.f32.mrf.mxu0
        %v1681 = vadd.f32 0.0, %v1680
        %v1682 = vpop.f32.mrf.mxu0
        %v1683 = vpop.f32.mrf.mxu0
        %v1684 = vadd.f32 0.0, %v1683
        %v1685 = vpop.f32.mrf.mxu0
        %1686 = vmatprep.mubr.bf16.mxu0 0
        %1687 = vmatmul.mubr.bf16.gmra.mxu0 %v1598
        %v1688 = vpop.f32.mrf.mxu0
        %v1689 = vadd.f32 0.0, %v1688
        %v1690 = vpop.f32.mrf.mxu0
        %v1691 = vpop.f32.mrf.mxu0
        %v1692 = vadd.f32 0.0, %v1691
        %v1693 = vpop.f32.mrf.mxu0
        %1694 = vmatprep.mubr.bf16.mxu0 0
        %1695 = vmatmul.mubr.bf16.gmra.mxu0 %v1601
        %v1696 = vpop.f32.mrf.mxu0
        %v1697 = vadd.f32 0.0, %v1696
        %v1698 = vpop.f32.mrf.mxu0
        %v1699 = vpop.f32.mrf.mxu0
        %v1700 = vadd.f32 0.0, %v1699
        %v1701 = vpop.f32.mrf.mxu0
        %1702 = vdwg.mxu0
        %1703 = vxpose.xlu0.b32.start [1/16] %v1641, 128
        %1704 = vxpose.xlu0.b32.cont [2/16] %v1644, 128
        %1705 = vxpose.xlu0.b32.cont [3/16] %v1649, 128
        %1706 = vxpose.xlu0.b32.cont [4/16] %v1652, 128
        %1707 = vxpose.xlu0.b32.cont [5/16] %v1657, 128
        %1708 = vxpose.xlu0.b32.cont [6/16] %v1660, 128
        %1709 = vxpose.xlu0.b32.cont [7/16] %v1665, 128
        %1710 = vxpose.xlu0.b32.cont [8/16] %v1668, 128
        %1711 = vxpose.xlu0.b32.cont [9/16] %v1673, 128
        %1712 = vxpose.xlu0.b32.cont [10/16] %v1676, 128
        %1713 = vxpose.xlu0.b32.cont [11/16] %v1681, 128
        %1714 = vxpose.xlu0.b32.cont [12/16] %v1684, 128
        %1715 = vxpose.xlu0.b32.cont [13/16] %v1689, 128
        %1716 = vxpose.xlu0.b32.cont [14/16] %v1692, 128
        %1717 = vxpose.xlu0.b32.cont [15/16] %v1697, 128
        %1718 = vxpose.xlu0.b32.end [16/16] %v1700, 128
        %v1719 = vpop.trf.xlu0
        %v1720 = vpop.trf.xlu0
        %v1721 = vpop.trf.xlu0
        %v1722 = vpop.trf.xlu0
        %v1723 = vpop.trf.xlu0
        %v1724 = vpop.trf.xlu0
        %v1725 = vpop.trf.xlu0
        %v1726 = vpop.trf.xlu0
        %v1727 = vpop.trf.xlu0
        %v1728 = vpop.trf.xlu0
        %v1729 = vpop.trf.xlu0
        %v1730 = vpop.trf.xlu0
        %v1731 = vpop.trf.xlu0
        %v1732 = vpop.trf.xlu0
        %v1733 = vpop.trf.xlu0
        %v1734 = vpop.trf.xlu0
        %v1735 = vmax.f32 %v1719, 0.0
        %v1736 = vmax.f32 %v1720, 0.0
        %v1737 = vadd.f32 %v1735, %v251
        %v1738 = vadd.f32 %v1736, %v252
        %1739 = vst [vmem:[%s244] sm:$0xff] %v1737
        %1740 = vst [vmem:[%s244 + $0x8] sm:$0xff] %v1738
        %s1741 = sand.u32 %s159, 1
        %s1742 = scalar_lea.sflag [#allocation3], %s1741
        %s1743 = sand.u32 %s159, 1
        %s1744 = smul.addr %s1743, 16
        %s1745 = scalar_lea.vmem [#allocation2], %s1744
        // Predicated region
        $region45: #{tpu_custom_call.1} parent=43 // pred_check
          %p1746 = pneg %p169
        $region46: #{tpu_custom_call.1} parent=43 // pred_check_branch
          %1748 = sbr.rel (%p1746) target = $region48
        $region47: #{tpu_custom_call.1} parent=43 // pred_region
          %s1750 = ssub.s32 256, 256
          %1751 = vsyncadd %s1742, %s1750
          %s1752 = smul.addr %s20, 2
          %s1753 = smul.addr %s1752, 128
          %s1754 = scalar_lea.hbm %s6, %s1753
          %s1755 = sshll.u32 %s1745, 4
          %s1756 = int_to_ptr.vmem [resolvable:$true] %s1755
          %1761 = dma.vmem_to_hbm [thread:$0]  %s1756, 256, %s1754, %s1742, 128, 128, 8
        $region48: #{tpu_custom_call.1} parent=43 // pred_fallthru
          _
      $region44: #{tpu_custom_call.1} parent=5 // pred_fallthru
        _
      %p1762 = scmp.le.s32.totalorder 2, %s15
      // Predicated region
      $region49: #{tpu_custom_call.1} parent=5 // pred_check
        %p1763 = pneg %p1762
      $region50: #{tpu_custom_call.1} parent=5 // pred_check_branch
        %1765 = sbr.rel (%p1763) target = $region52
      $region51: #{tpu_custom_call.1} parent=5 // pred_region
        %s1766 = ssub.s32 %s15, 2
        // Predicated region
        $region53: #{tpu_custom_call.1} parent=51 // pred_check
          %p1767 = pneg %p175
        $region54: #{tpu_custom_call.1} parent=51 // pred_check_branch
          %1769 = sbr.rel (%p1767) target = $region56
        $region55: #{tpu_custom_call.1} parent=51 // pred_region
          %s1770 = sand.u32 %s160, 1
          %s1771 = scalar_lea.sflag [#allocation3], %s1770
          %s1772 = sand.u32 %s160, 1
          %s1773 = smul.addr %s1772, 16
          %s1774 = scalar_lea.vmem [#allocation2], %s1773
          %1775 = dma.done %s1771, 256
        $region56: #{tpu_custom_call.1} parent=51 // pred_fallthru
          _
      $region52: #{tpu_custom_call.1} parent=5 // pred_fallthru
        _
    $region6: #{tpu_custom_call.1} parent=1 // loop_footer
      %s19 = sadd.s32 1, %s15
    $region7: #{tpu_custom_call.1} parent=1 // loop_footer_branch
      %14 = sbr.rel target = $region3
    $region8: #{tpu_custom_call.1} parent=1 // loop_exit
      _
    %1776 = vsyncpa [#allocation3], 1
    %s1777 = scalar_lea.sflag [#allocation3], 1
    %1778 = vsyncpa %s1777, 1

</llo_original>
